<compile_context>
chip_gen: v6e
topology: v6e:2x2x1
jax: 0.10.0
libtpu: 0.0.40
codegen_flags: <defaults>
</compile_context>

<pallas_src>
import jax
import jax.numpy as jnp
from jax.experimental import pallas as pl
from jax.experimental.pallas import tpu as pltpu

# ---- sizes (small, consistent with the forward signature) ----
B = 2                     # example batch
C, H_IMG, W_IMG = 3, 16, 16
IMG_FLAT = C * H_IMG * W_IMG          # 768
SEQ = 8                   # sequence length for html / url tokens
VOCAB = 64
CNN_FEAT = 128            # cnn_fc_features
HTML_HIDDEN = 128         # BasicTransformerClassifier bert hidden_size
URL_HIDDEN = 128          # BasicUrlUltraSkinnyBertClassifier hidden_size
TOTAL_FEAT = CNN_FEAT + HTML_HIDDEN + URL_HIDDEN   # 384
MLP_HIDDEN = 512
NUM_CLASSES = 2
OUT_PAD = 128             # lane-dense padded logits width (sliced to 2 in wrapper)


def _round_up(x, m):
    return ((x + m - 1) // m) * m


def _max_batch_tile():
    # v5e (and older) MXUs are 128x128 -> cap TM at 128; v6e/v7x are 256-wide.
    try:
        kind = jax.devices()[0].device_kind.lower()
    except Exception:
        kind = ""
    if any(v in kind for v in ("v2", "v3", "v4", "v5")):
        return 128
    return 256


def ensemble_kernel(img_ref, hbag_ref, ubag_ref,
                    wc_ref, bc_ref, htab_ref, utab_ref,
                    w1_ref, b1_ref, w2_ref, b2_ref,
                    out_ref, feat_ref):
    f32 = jnp.float32
    bf16 = jnp.bfloat16

    # --- BasicCNNClassifier backbone (classifier head replaced by Identity) ---
    cnn = jnp.dot(img_ref[...], wc_ref[...], preferred_element_type=f32)
    cnn = jnp.maximum(cnn + bc_ref[...], 0.0)                       # [TM, 128] f32

    # --- Transformer / skinny-BERT backbones: masked mean pooling ---
    # pooled = sum_s mask_s/count * E[id_s] == bag @ E, with the per-row weighted
    # vocab histogram ("bag") built in the wrapper and the [VOCAB,128] embedding
    # tables VMEM-resident.  One small MXU matmul per stream, no XLU reduction.
    h_feat = jnp.dot(hbag_ref[...], htab_ref[...], preferred_element_type=f32)
    u_feat = jnp.dot(ubag_ref[...], utab_ref[...], preferred_element_type=f32)

    # --- ensemble head: torch.cat(dim=1) as lane-aligned scratch writes ---
    feat_ref[:, 0:CNN_FEAT] = cnn.astype(bf16)
    feat_ref[:, CNN_FEAT:CNN_FEAT + HTML_HIDDEN] = h_feat.astype(bf16)
    feat_ref[:, CNN_FEAT + HTML_HIDDEN:TOTAL_FEAT] = u_feat.astype(bf16)

    # Linear(384,512) + ReLU as a single K=384 MXU dot; Dropout(0.3) is identity
    # at inference time.
    hid = jnp.dot(feat_ref[...], w1_ref[...], preferred_element_type=f32)
    hid = jnp.maximum(hid + b1_ref[...], 0.0)                       # [TM, 512] f32
    # Linear(512, 2) with output lanes zero-padded to 128 (lane-dense store).
    logits = jnp.dot(hid.astype(bf16), w2_ref[...], preferred_element_type=f32)
    out_ref[...] = logits + b2_ref[...]                             # [TM, 128]


def ensemble_forward(html_input_ids, html_attention_mask,
                     url_input_ids, url_attention_mask,
                     image, params):
    b = image.shape[0]
    # Adaptive batch tile: minimum legal 16-row (bf16 sublane) multiple for small
    # batches; up to 128 (v5e) / 256 (v6e, v7x) for large batches.
    tm = min(_max_batch_tile(), _round_up(max(b, 1), 16))
    b_pad = _round_up(b, tm)
    pad = b_pad - b

    # ---- wrapper-side layout plumbing (flatten, bag build, minimal padding) ----
    img_flat = image.reshape(b, IMG_FLAT).astype(jnp.bfloat16)

    def make_bag(ids, mask):
        # bag[r, v] = sum_s [ids[r,s] == v] * mask[r,s] / clamp(count_r, 1)
        m = mask.astype(jnp.float32)
        w = m / jnp.maximum(jnp.sum(m, axis=1, keepdims=True), 1.0)      # [b, SEQ]
        one_hot = jax.nn.one_hot(ids, VOCAB, dtype=jnp.float32)          # [b, S, V]
        return jnp.sum(one_hot * w[..., None], axis=1).astype(jnp.bfloat16)

    html_bag = make_bag(html_input_ids, html_attention_mask)             # [b, 64]
    url_bag = make_bag(url_input_ids, url_attention_mask)                # [b, 64]

    if pad:
        img_flat = jnp.pad(img_flat, ((0, pad), (0, 0)))
        html_bag = jnp.pad(html_bag, ((0, pad), (0, 0)))
        url_bag = jnp.pad(url_bag, ((0, pad), (0, 0)))

    # ---- weights: bf16 MXU operands, f32 biases; w2/b2 padded to 128 lanes ----
    w_cnn = params["w_cnn"].astype(jnp.bfloat16)
    b_cnn = params["b_cnn"]
    htab = params["html_emb_table"].astype(jnp.bfloat16)
    utab = params["url_emb_table"].astype(jnp.bfloat16)
    w1 = params["w1"].astype(jnp.bfloat16)                   # single [384,512] block
    b1 = params["b1"]
    w2 = jnp.pad(params["w2"].astype(jnp.bfloat16),
                 ((0, 0), (0, OUT_PAD - NUM_CLASSES)))
    b2 = jnp.pad(params["b2"], ((0, 0), (0, OUT_PAD - NUM_CLASSES)))

    grid = (b_pad // tm,)
    batch = lambda i: (i, 0)
    resident = lambda i: (0, 0)        # weights: same block every step (no re-DMA)

    out = pl.pallas_call(
        ensemble_kernel,
        out_shape=jax.ShapeDtypeStruct((b_pad, OUT_PAD), jnp.float32),
        grid_spec=pltpu.PrefetchScalarGridSpec(
            num_scalar_prefetch=0,
            grid=grid,
            in_specs=[
                pl.BlockSpec((tm, IMG_FLAT), batch),              # flattened image
                pl.BlockSpec((tm, VOCAB), batch),                 # html bag
                pl.BlockSpec((tm, VOCAB), batch),                 # url bag
                pl.BlockSpec((IMG_FLAT, CNN_FEAT), resident),     # w_cnn
                pl.BlockSpec((1, CNN_FEAT), resident),            # b_cnn
                pl.BlockSpec((VOCAB, HTML_HIDDEN), resident),     # html emb table
                pl.BlockSpec((VOCAB, URL_HIDDEN), resident),      # url emb table
                pl.BlockSpec((TOTAL_FEAT, MLP_HIDDEN), resident), # w1
                pl.BlockSpec((1, MLP_HIDDEN), resident),          # b1
                pl.BlockSpec((MLP_HIDDEN, OUT_PAD), resident),    # w2 (lane-padded)
                pl.BlockSpec((1, OUT_PAD), resident),             # b2 (lane-padded)
            ],
            out_specs=pl.BlockSpec((tm, OUT_PAD), batch),
            scratch_shapes=[pltpu.VMEM((tm, TOTAL_FEAT), jnp.bfloat16)],
        ),
        compiler_params=pltpu.CompilerParams(
            dimension_semantics=("parallel",),   # batch tiles shard across TCs (v7x)
            vmem_limit_bytes=32 * 1024 * 1024,
        ),
    )(img_flat, html_bag, url_bag,
      w_cnn, b_cnn, htab, utab, w1, b1, w2, b2)

    return out[:b, :NUM_CLASSES]


ensemble_forward = jax.jit(ensemble_forward)


def init_params(key):
    ks = jax.random.split(key, 5)

    def init(k, shape, scale=0.02):
        return jax.random.normal(k, shape, jnp.float32) * scale

    return {
        "w_cnn": init(ks[0], (IMG_FLAT, CNN_FEAT)),
        "b_cnn": jnp.zeros((1, CNN_FEAT), jnp.float32),
        "html_emb_table": init(ks[1], (VOCAB, HTML_HIDDEN)),
        "url_emb_table": init(ks[2], (VOCAB, URL_HIDDEN)),
        "w1": init(ks[3], (TOTAL_FEAT, MLP_HIDDEN)),
        "b1": jnp.zeros((1, MLP_HIDDEN), jnp.float32),
        "w2": init(ks[4], (MLP_HIDDEN, NUM_CLASSES)),
        "b2": jnp.zeros((1, NUM_CLASSES), jnp.float32),
    }


if __name__ == "__main__":
    root = jax.random.PRNGKey(0)
    k_param, k_img, k_html, k_url = jax.random.split(root, 4)

    params = init_params(k_param)

    image = jax.random.normal(k_img, (B, C, H_IMG, W_IMG), jnp.float32)
    html_input_ids = jax.random.randint(k_html, (B, SEQ), 0, VOCAB, jnp.int32)
    url_input_ids = jax.random.randint(k_url, (B, SEQ), 0, VOCAB, jnp.int32)
    # attention masks: first sample has 6/5 valid tokens, second has all 8
    html_attention_mask = jnp.array(
        [[1, 1, 1, 1, 1, 1, 0, 0], [1, 1, 1, 1, 1, 1, 1, 1]], jnp.int32)
    url_attention_mask = jnp.array(
        [[1, 1, 1, 1, 1, 0, 0, 0], [1, 1, 1, 1, 1, 1, 1, 1]], jnp.int32)

    logits = ensemble_forward(html_input_ids, html_attention_mask,
                              url_input_ids, url_attention_mask,
                              image, params)
    jax.block_until_ready(logits)
    assert logits.shape == (B, NUM_CLASSES) and logits.dtype == jnp.float32
    assert bool(jnp.all(jnp.isfinite(logits)))
    print("KERNEL_OK")
</pallas_src>

<mosaic_0001>
module attributes {stable_mosaic.version = 11 : i64} {
  func.func @ensemble_kernel(%arg0: i32, %arg1: memref<16x768xbf16, #tpu.memory_space<vmem>>, %arg2: memref<16x64xbf16, #tpu.memory_space<vmem>>, %arg3: memref<16x64xbf16, #tpu.memory_space<vmem>>, %arg4: memref<768x128xbf16, #tpu.memory_space<vmem>>, %arg5: memref<1x128xf32, #tpu.memory_space<vmem>>, %arg6: memref<64x128xbf16, #tpu.memory_space<vmem>>, %arg7: memref<64x128xbf16, #tpu.memory_space<vmem>>, %arg8: memref<384x512xbf16, #tpu.memory_space<vmem>>, %arg9: memref<1x512xf32, #tpu.memory_space<vmem>>, %arg10: memref<512x128xbf16, #tpu.memory_space<vmem>>, %arg11: memref<1x128xf32, #tpu.memory_space<vmem>>, %arg12: memref<16x128xf32, #tpu.memory_space<vmem>>, %arg13: memref<16x384xbf16, #tpu.memory_space<vmem>>) attributes {dimension_semantics = [#tpu.dimension_semantics<parallel>], iteration_bounds = array<i64: 1>, scalar_prefetch = 0 : i64, scratch_operands = 1 : i64, tpu.core_type = #tpu.core_type<tc>, window_params = [{transform_indices = @transform_0, window_bounds = array<i64: 16, 768>}, {transform_indices = @transform_1, window_bounds = array<i64: 16, 64>}, {transform_indices = @transform_2, window_bounds = array<i64: 16, 64>}, {pipeline_mode = #tpu.pipeline_mode<synchronous>, transform_indices = @transform_3, window_bounds = array<i64: 768, 128>}, {pipeline_mode = #tpu.pipeline_mode<synchronous>, transform_indices = @transform_4, window_bounds = array<i64: 1, 128>}, {pipeline_mode = #tpu.pipeline_mode<synchronous>, transform_indices = @transform_5, window_bounds = array<i64: 64, 128>}, {pipeline_mode = #tpu.pipeline_mode<synchronous>, transform_indices = @transform_6, window_bounds = array<i64: 64, 128>}, {pipeline_mode = #tpu.pipeline_mode<synchronous>, transform_indices = @transform_7, window_bounds = array<i64: 384, 512>}, {pipeline_mode = #tpu.pipeline_mode<synchronous>, transform_indices = @transform_8, window_bounds = array<i64: 1, 512>}, {pipeline_mode = #tpu.pipeline_mode<synchronous>, transform_indices = @transform_9, window_bounds = array<i64: 512, 128>}, {pipeline_mode = #tpu.pipeline_mode<synchronous>, transform_indices = @transform_10, window_bounds = array<i64: 1, 128>}, {transform_indices = @transform_11, window_bounds = array<i64: 16, 128>}]} {
    %c0 = arith.constant 0 : index
    %c0_0 = arith.constant 0 : index
    %0 = vector.load %arg1[%c0, %c0_0] : memref<16x768xbf16, #tpu.memory_space<vmem>>, vector<16x768xbf16>
    %c0_1 = arith.constant 0 : index
    %c0_2 = arith.constant 0 : index
    %1 = vector.load %arg4[%c0_1, %c0_2] : memref<768x128xbf16, #tpu.memory_space<vmem>>, vector<768x128xbf16>
    %cst = arith.constant dense<0.000000e+00> : vector<16x128xf32>
    %2 = tpu.matmul %0, %1, %cst {dimension_numbers = #tpu.dot_dimension_numbers<[1], [0], [0], [1], [0, 0, 1, 1], [], []>} : vector<16x768xbf16>, vector<768x128xbf16>, vector<16x128xf32> -> vector<16x128xf32>
    %c0_3 = arith.constant 0 : index
    %c0_4 = arith.constant 0 : index
    %3 = vector.load %arg5[%c0_3, %c0_4] : memref<1x128xf32, #tpu.memory_space<vmem>>, vector<1x128xf32>
    %4 = vector.broadcast %3 : vector<1x128xf32> to vector<16x128xf32>
    %5 = arith.addf %2, %4 : vector<16x128xf32>
    %cst_5 = arith.constant 0.000000e+00 : f32
    %6 = vector.broadcast %cst_5 : f32 to vector<16x128xf32>
    %7 = arith.maximumf %5, %6 : vector<16x128xf32>
    %c0_6 = arith.constant 0 : index
    %c0_7 = arith.constant 0 : index
    %8 = vector.load %arg2[%c0_6, %c0_7] : memref<16x64xbf16, #tpu.memory_space<vmem>>, vector<16x64xbf16>
    %c0_8 = arith.constant 0 : index
    %c0_9 = arith.constant 0 : index
    %9 = vector.load %arg6[%c0_8, %c0_9] : memref<64x128xbf16, #tpu.memory_space<vmem>>, vector<64x128xbf16>
    %cst_10 = arith.constant dense<0.000000e+00> : vector<16x128xf32>
    %10 = tpu.matmul %8, %9, %cst_10 {dimension_numbers = #tpu.dot_dimension_numbers<[1], [0], [0], [1], [0, 0, 1, 1], [], []>} : vector<16x64xbf16>, vector<64x128xbf16>, vector<16x128xf32> -> vector<16x128xf32>
    %c0_11 = arith.constant 0 : index
    %c0_12 = arith.constant 0 : index
    %11 = vector.load %arg3[%c0_11, %c0_12] : memref<16x64xbf16, #tpu.memory_space<vmem>>, vector<16x64xbf16>
    %c0_13 = arith.constant 0 : index
    %c0_14 = arith.constant 0 : index
    %12 = vector.load %arg7[%c0_13, %c0_14] : memref<64x128xbf16, #tpu.memory_space<vmem>>, vector<64x128xbf16>
    %cst_15 = arith.constant dense<0.000000e+00> : vector<16x128xf32>
    %13 = tpu.matmul %11, %12, %cst_15 {dimension_numbers = #tpu.dot_dimension_numbers<[1], [0], [0], [1], [0, 0, 1, 1], [], []>} : vector<16x64xbf16>, vector<64x128xbf16>, vector<16x128xf32> -> vector<16x128xf32>
    %14 = arith.truncf %7 : vector<16x128xf32> to vector<16x128xbf16>
    %c0_16 = arith.constant 0 : index
    %c0_17 = arith.constant 0 : index
    %15 = vector.load %arg13[%c0_16, %c0_17] : memref<16x384xbf16, #tpu.memory_space<vmem>>, vector<16x128xbf16>
    tpu.vector_store %arg13[%c0_16, %c0_17], %14 {strides = array<i32>} : memref<16x384xbf16, #tpu.memory_space<vmem>>, vector<16x128xbf16>,
    %16 = arith.truncf %10 : vector<16x128xf32> to vector<16x128xbf16>
    %c0_18 = arith.constant 0 : index
    %c128 = arith.constant 128 : index
    %17 = vector.load %arg13[%c0_18, %c128] : memref<16x384xbf16, #tpu.memory_space<vmem>>, vector<16x128xbf16>
    tpu.vector_store %arg13[%c0_18, %c128], %16 {strides = array<i32>} : memref<16x384xbf16, #tpu.memory_space<vmem>>, vector<16x128xbf16>,
    %18 = arith.truncf %13 : vector<16x128xf32> to vector<16x128xbf16>
    %c0_19 = arith.constant 0 : index
    %c256 = arith.constant 256 : index
    %19 = vector.load %arg13[%c0_19, %c256] : memref<16x384xbf16, #tpu.memory_space<vmem>>, vector<16x128xbf16>
    tpu.vector_store %arg13[%c0_19, %c256], %18 {strides = array<i32>} : memref<16x384xbf16, #tpu.memory_space<vmem>>, vector<16x128xbf16>,
    %c0_20 = arith.constant 0 : index
    %c0_21 = arith.constant 0 : index
    %20 = vector.load %arg13[%c0_20, %c0_21] : memref<16x384xbf16, #tpu.memory_space<vmem>>, vector<16x384xbf16>
    %c0_22 = arith.constant 0 : index
    %c0_23 = arith.constant 0 : index
    %21 = vector.load %arg8[%c0_22, %c0_23] : memref<384x512xbf16, #tpu.memory_space<vmem>>, vector<384x512xbf16>
    %cst_24 = arith.constant dense<0.000000e+00> : vector<16x512xf32>
    %22 = tpu.matmul %20, %21, %cst_24 {dimension_numbers = #tpu.dot_dimension_numbers<[1], [0], [0], [1], [0, 0, 1, 1], [], []>} : vector<16x384xbf16>, vector<384x512xbf16>, vector<16x512xf32> -> vector<16x512xf32>
    %c0_25 = arith.constant 0 : index
    %c0_26 = arith.constant 0 : index
    %23 = vector.load %arg9[%c0_25, %c0_26] : memref<1x512xf32, #tpu.memory_space<vmem>>, vector<1x512xf32>
    %24 = vector.broadcast %23 : vector<1x512xf32> to vector<16x512xf32>
    %25 = arith.addf %22, %24 : vector<16x512xf32>
    %cst_27 = arith.constant 0.000000e+00 : f32
    %26 = vector.broadcast %cst_27 : f32 to vector<16x512xf32>
    %27 = arith.maximumf %25, %26 : vector<16x512xf32>
    %28 = arith.truncf %27 : vector<16x512xf32> to vector<16x512xbf16>
    %c0_28 = arith.constant 0 : index
    %c0_29 = arith.constant 0 : index
    %29 = vector.load %arg10[%c0_28, %c0_29] : memref<512x128xbf16, #tpu.memory_space<vmem>>, vector<512x128xbf16>
    %cst_30 = arith.constant dense<0.000000e+00> : vector<16x128xf32>
    %30 = tpu.matmul %28, %29, %cst_30 {dimension_numbers = #tpu.dot_dimension_numbers<[1], [0], [0], [1], [0, 0, 1, 1], [], []>} : vector<16x512xbf16>, vector<512x128xbf16>, vector<16x128xf32> -> vector<16x128xf32>
    %c0_31 = arith.constant 0 : index
    %c0_32 = arith.constant 0 : index
    %31 = vector.load %arg11[%c0_31, %c0_32] : memref<1x128xf32, #tpu.memory_space<vmem>>, vector<1x128xf32>
    %32 = vector.broadcast %31 : vector<1x128xf32> to vector<16x128xf32>
    %33 = arith.addf %30, %32 : vector<16x128xf32>
    %c0_33 = arith.constant 0 : index
    %c0_34 = arith.constant 0 : index
    %34 = vector.load %arg12[%c0_33, %c0_34] : memref<16x128xf32, #tpu.memory_space<vmem>>, vector<16x128xf32>
    tpu.vector_store %arg12[%c0_33, %c0_34], %33 {strides = array<i32>} : memref<16x128xf32, #tpu.memory_space<vmem>>, vector<16x128xf32>,
    return
  }
  func.func @transform_0(%arg0: i32) -> (i32, i32) {
    %c0_i32 = arith.constant 0 : i32
    %c0_i32_0 = arith.constant 0 : i32
    return %arg0, %c0_i32 : i32, i32
  }
  func.func @transform_1(%arg0: i32) -> (i32, i32) {
    %c0_i32 = arith.constant 0 : i32
    %c0_i32_0 = arith.constant 0 : i32
    return %arg0, %c0_i32 : i32, i32
  }
  func.func @transform_2(%arg0: i32) -> (i32, i32) {
    %c0_i32 = arith.constant 0 : i32
    %c0_i32_0 = arith.constant 0 : i32
    return %arg0, %c0_i32 : i32, i32
  }
  func.func @transform_3(%arg0: i32) -> (i32, i32) {
    %c0_i32 = arith.constant 0 : i32
    %c0_i32_0 = arith.constant 0 : i32
    %c0_i32_1 = arith.constant 0 : i32
    return %c0_i32, %c0_i32_0 : i32, i32
  }
  func.func @transform_4(%arg0: i32) -> (i32, i32) {
    %c0_i32 = arith.constant 0 : i32
    %c0_i32_0 = arith.constant 0 : i32
    %c0_i32_1 = arith.constant 0 : i32
    return %c0_i32, %c0_i32_0 : i32, i32
  }
  func.func @transform_5(%arg0: i32) -> (i32, i32) {
    %c0_i32 = arith.constant 0 : i32
    %c0_i32_0 = arith.constant 0 : i32
    %c0_i32_1 = arith.constant 0 : i32
    return %c0_i32, %c0_i32_0 : i32, i32
  }
  func.func @transform_6(%arg0: i32) -> (i32, i32) {
    %c0_i32 = arith.constant 0 : i32
    %c0_i32_0 = arith.constant 0 : i32
    %c0_i32_1 = arith.constant 0 : i32
    return %c0_i32, %c0_i32_0 : i32, i32
  }
  func.func @transform_7(%arg0: i32) -> (i32, i32) {
    %c0_i32 = arith.constant 0 : i32
    %c0_i32_0 = arith.constant 0 : i32
    %c0_i32_1 = arith.constant 0 : i32
    return %c0_i32, %c0_i32_0 : i32, i32
  }
  func.func @transform_8(%arg0: i32) -> (i32, i32) {
    %c0_i32 = arith.constant 0 : i32
    %c0_i32_0 = arith.constant 0 : i32
    %c0_i32_1 = arith.constant 0 : i32
    return %c0_i32, %c0_i32_0 : i32, i32
  }
  func.func @transform_9(%arg0: i32) -> (i32, i32) {
    %c0_i32 = arith.constant 0 : i32
    %c0_i32_0 = arith.constant 0 : i32
    %c0_i32_1 = arith.constant 0 : i32
    return %c0_i32, %c0_i32_0 : i32, i32
  }
  func.func @transform_10(%arg0: i32) -> (i32, i32) {
    %c0_i32 = arith.constant 0 : i32
    %c0_i32_0 = arith.constant 0 : i32
    %c0_i32_1 = arith.constant 0 : i32
    return %c0_i32, %c0_i32_0 : i32, i32
  }
  func.func @transform_11(%arg0: i32) -> (i32, i32) {
    %c0_i32 = arith.constant 0 : i32
    %c0_i32_0 = arith.constant 0 : i32
    return %arg0, %c0_i32 : i32, i32
  }
}

</mosaic_0001>

<llo_original>
// kernel: ensemble_forward.1
$region0: #{ensemble_forward.1}
  #allocation0 [shape = 'u32[]', space=smem, size = 0x4, offset = 0x4, fixed_abs, tag = 'smem constant byte address 0x4 - core index']
  #allocation1 [shape = 'u32[144,128]{1,0:T(1,128)}', space=vmem, size = 0x12000, scoped, tag = 'internal scratch']
  #allocation2 [shape = 'bf16[16,384]{1,0:T(8,128)(2,1)}', space=vmem, size = 0x3000, scoped, tag = 'scratch operand']
  %s0 = inlined_call_operand.vmem [shape: bf16[16,768], index: 0, kind: input, shape index: {}]
  %s1 = inlined_call_operand.vmem [shape: bf16[16,64], index: 1, kind: input, shape index: {}]
  %s2 = inlined_call_operand.vmem [shape: bf16[16,64], index: 2, kind: input, shape index: {}]
  %s3 = inlined_call_operand.vmem [shape: bf16[768,128], index: 3, kind: input, shape index: {}]
  %s4 = inlined_call_operand.vmem [shape: f32[1,128], index: 4, kind: input, shape index: {}]
  %s5 = inlined_call_operand.vmem [shape: bf16[64,128], index: 5, kind: input, shape index: {}]
  %s6 = inlined_call_operand.vmem [shape: bf16[64,128], index: 6, kind: input, shape index: {}]
  %s7 = inlined_call_operand.vmem [shape: bf16[384,512], index: 7, kind: input, shape index: {}]
  %s8 = inlined_call_operand.vmem [shape: f32[1,512], index: 8, kind: input, shape index: {}]
  %s9 = inlined_call_operand.vmem [shape: bf16[512,128], index: 9, kind: input, shape index: {}]
  %s10 = inlined_call_operand.vmem [shape: f32[1,128], index: 10, kind: input, shape index: {}]
  %s11 = inlined_call_operand.vmem [shape: f32[16,128], index: 11, kind: output, shape index: {}]
  %s12 = sld [smem:[#allocation0]]
  $region54: #{ensemble_forward.1} parent=0
    _
  %s14 = ssub.s32 1, %s12
  %s15 = scalar_select 0, %s14, %s12
  // Predicated region
  $region2: #{ensemble_forward.1} parent=0 // pred_check
    _
  $region3: #{ensemble_forward.1} parent=0 // pred_check_branch
    %17 = sbr.rel (0) target = $region5
  $region4: #{ensemble_forward.1} parent=0 // pred_region
    _
  $region5: #{ensemble_forward.1} parent=0 // pred_fallthru
    _
  // Predicated region
  $region6: #{ensemble_forward.1} parent=0 // pred_check
    _
  $region7: #{ensemble_forward.1} parent=0 // pred_check_branch
    %19 = sbr.rel (0) target = $region9
  $region8: #{ensemble_forward.1} parent=0 // pred_region
    _
  $region9: #{ensemble_forward.1} parent=0 // pred_fallthru
    _
  // Predicated region
  $region10: #{ensemble_forward.1} parent=0 // pred_check
    _
  $region11: #{ensemble_forward.1} parent=0 // pred_check_branch
    %21 = sbr.rel (0) target = $region13
  $region12: #{ensemble_forward.1} parent=0 // pred_region
    _
  $region13: #{ensemble_forward.1} parent=0 // pred_fallthru
    _
  // Predicated region
  $region14: #{ensemble_forward.1} parent=0 // pred_check
    _
  $region15: #{ensemble_forward.1} parent=0 // pred_check_branch
    %23 = sbr.rel (0) target = $region17
  $region16: #{ensemble_forward.1} parent=0 // pred_region
    _
  $region17: #{ensemble_forward.1} parent=0 // pred_fallthru
    _
  // Predicated region
  $region18: #{ensemble_forward.1} parent=0 // pred_check
    _
  $region19: #{ensemble_forward.1} parent=0 // pred_check_branch
    %25 = sbr.rel (0) target = $region21
  $region20: #{ensemble_forward.1} parent=0 // pred_region
    _
  $region21: #{ensemble_forward.1} parent=0 // pred_fallthru
    _
  // Predicated region
  $region22: #{ensemble_forward.1} parent=0 // pred_check
    _
  $region23: #{ensemble_forward.1} parent=0 // pred_check_branch
    %27 = sbr.rel (0) target = $region25
  $region24: #{ensemble_forward.1} parent=0 // pred_region
    _
  $region25: #{ensemble_forward.1} parent=0 // pred_fallthru
    _
  // Predicated region
  $region26: #{ensemble_forward.1} parent=0 // pred_check
    _
  $region27: #{ensemble_forward.1} parent=0 // pred_check_branch
    %29 = sbr.rel (0) target = $region29
  $region28: #{ensemble_forward.1} parent=0 // pred_region
    _
  $region29: #{ensemble_forward.1} parent=0 // pred_fallthru
    _
  // Predicated region
  $region30: #{ensemble_forward.1} parent=0 // pred_check
    _
  $region31: #{ensemble_forward.1} parent=0 // pred_check_branch
    %31 = sbr.rel (0) target = $region33
  $region32: #{ensemble_forward.1} parent=0 // pred_region
    _
  $region33: #{ensemble_forward.1} parent=0 // pred_fallthru
    _
  // Predicated region
  $region34: #{ensemble_forward.1} parent=0 // pred_check
    _
  $region35: #{ensemble_forward.1} parent=0 // pred_check_branch
    %33 = sbr.rel (0) target = $region37
  $region36: #{ensemble_forward.1} parent=0 // pred_region
    _
  $region37: #{ensemble_forward.1} parent=0 // pred_fallthru
    _
  // Predicated region
  $region38: #{ensemble_forward.1} parent=0 // pred_check
    _
  $region39: #{ensemble_forward.1} parent=0 // pred_check_branch
    %35 = sbr.rel (0) target = $region41
  $region40: #{ensemble_forward.1} parent=0 // pred_region
    _
  $region41: #{ensemble_forward.1} parent=0 // pred_fallthru
    _
  // Predicated region
  $region42: #{ensemble_forward.1} parent=0 // pred_check
    _
  $region43: #{ensemble_forward.1} parent=0 // pred_check_branch
    %37 = sbr.rel (0) target = $region45
  $region44: #{ensemble_forward.1} parent=0 // pred_region
    _
  $region45: #{ensemble_forward.1} parent=0 // pred_fallthru
    _
  %v39 = vld [vmem:[%s0] sm:$0xff]
  %v40 = vld [vmem:[%s0 + $0x8] sm:$0xff]
  %v41 = vld [vmem:[%s0 + $0x10] sm:$0xff]
  %v42 = vld [vmem:[%s0 + $0x18] sm:$0xff]
  %v43 = vld [vmem:[%s0 + $0x20] sm:$0xff]
  %v44 = vld [vmem:[%s0 + $0x28] sm:$0xff]
  %v45 = vld [vmem:[%s3] sm:$0xf]
  %v46 = vld [vmem:[%s3 + $0x4] sm:$0xf]
  %v47 = vld [vmem:[%s3 + $0x8] sm:$0xf]
  %v48 = vld [vmem:[%s3 + $0xc] sm:$0xf]
  %v49 = vld [vmem:[%s3 + $0x10] sm:$0xf]
  %v50 = vld [vmem:[%s3 + $0x14] sm:$0xf]
  %v51 = vld [vmem:[%s3 + $0x18] sm:$0xf]
  %v52 = vld [vmem:[%s3 + $0x1c] sm:$0xf]
  %v53 = vld [vmem:[%s3 + $0x20] sm:$0xf]
  %v54 = vld [vmem:[%s3 + $0x24] sm:$0xf]
  %v55 = vld [vmem:[%s3 + $0x28] sm:$0xf]
  %v56 = vld [vmem:[%s3 + $0x2c] sm:$0xf]
  %v57 = vld [vmem:[%s3 + $0x30] sm:$0xf]
  %v58 = vld [vmem:[%s3 + $0x34] sm:$0xf]
  %v59 = vld [vmem:[%s3 + $0x38] sm:$0xf]
  %v60 = vld [vmem:[%s3 + $0x3c] sm:$0xf]
  %v61 = vld [vmem:[%s3 + $0x40] sm:$0xf]
  %v62 = vld [vmem:[%s3 + $0x44] sm:$0xf]
  %v63 = vld [vmem:[%s3 + $0x48] sm:$0xf]
  %v64 = vld [vmem:[%s3 + $0x4c] sm:$0xf]
  %v65 = vld [vmem:[%s3 + $0x50] sm:$0xf]
  %v66 = vld [vmem:[%s3 + $0x54] sm:$0xf]
  %v67 = vld [vmem:[%s3 + $0x58] sm:$0xf]
  %v68 = vld [vmem:[%s3 + $0x5c] sm:$0xf]
  %v69 = vld [vmem:[%s3 + $0x60] sm:$0xf]
  %v70 = vld [vmem:[%s3 + $0x64] sm:$0xf]
  %v71 = vld [vmem:[%s3 + $0x68] sm:$0xf]
  %v72 = vld [vmem:[%s3 + $0x6c] sm:$0xf]
  %v73 = vld [vmem:[%s3 + $0x70] sm:$0xf]
  %v74 = vld [vmem:[%s3 + $0x74] sm:$0xf]
  %v75 = vld [vmem:[%s3 + $0x78] sm:$0xf]
  %v76 = vld [vmem:[%s3 + $0x7c] sm:$0xf]
  %v77 = vld [vmem:[%s3 + $0x80] sm:$0xf]
  %v78 = vld [vmem:[%s3 + $0x84] sm:$0xf]
  %v79 = vld [vmem:[%s3 + $0x88] sm:$0xf]
  %v80 = vld [vmem:[%s3 + $0x8c] sm:$0xf]
  %v81 = vld [vmem:[%s3 + $0x90] sm:$0xf]
  %v82 = vld [vmem:[%s3 + $0x94] sm:$0xf]
  %v83 = vld [vmem:[%s3 + $0x98] sm:$0xf]
  %v84 = vld [vmem:[%s3 + $0x9c] sm:$0xf]
  %v85 = vld [vmem:[%s3 + $0xa0] sm:$0xf]
  %v86 = vld [vmem:[%s3 + $0xa4] sm:$0xf]
  %v87 = vld [vmem:[%s3 + $0xa8] sm:$0xf]
  %v88 = vld [vmem:[%s3 + $0xac] sm:$0xf]
  %v89 = vld [vmem:[%s3 + $0xb0] sm:$0xf]
  %v90 = vld [vmem:[%s3 + $0xb4] sm:$0xf]
  %v91 = vld [vmem:[%s3 + $0xb8] sm:$0xf]
  %v92 = vld [vmem:[%s3 + $0xbc] sm:$0xf]
  %v93 = vld [vmem:[%s3 + $0xc0] sm:$0xf]
  %v94 = vld [vmem:[%s3 + $0xc4] sm:$0xf]
  %v95 = vld [vmem:[%s3 + $0xc8] sm:$0xf]
  %v96 = vld [vmem:[%s3 + $0xcc] sm:$0xf]
  %v97 = vld [vmem:[%s3 + $0xd0] sm:$0xf]
  %v98 = vld [vmem:[%s3 + $0xd4] sm:$0xf]
  %v99 = vld [vmem:[%s3 + $0xd8] sm:$0xf]
  %v100 = vld [vmem:[%s3 + $0xdc] sm:$0xf]
  %v101 = vld [vmem:[%s3 + $0xe0] sm:$0xf]
  %v102 = vld [vmem:[%s3 + $0xe4] sm:$0xf]
  %v103 = vld [vmem:[%s3 + $0xe8] sm:$0xf]
  %v104 = vld [vmem:[%s3 + $0xec] sm:$0xf]
  %v105 = vld [vmem:[%s3 + $0xf0] sm:$0xf]
  %v106 = vld [vmem:[%s3 + $0xf4] sm:$0xf]
  %v107 = vld [vmem:[%s3 + $0xf8] sm:$0xf]
  %v108 = vld [vmem:[%s3 + $0xfc] sm:$0xf]
  %v109 = vld [vmem:[%s3 + $0x100] sm:$0xf]
  %v110 = vld [vmem:[%s3 + $0x104] sm:$0xf]
  %v111 = vld [vmem:[%s3 + $0x108] sm:$0xf]
  %v112 = vld [vmem:[%s3 + $0x10c] sm:$0xf]
  %v113 = vld [vmem:[%s3 + $0x110] sm:$0xf]
  %v114 = vld [vmem:[%s3 + $0x114] sm:$0xf]
  %v115 = vld [vmem:[%s3 + $0x118] sm:$0xf]
  %v116 = vld [vmem:[%s3 + $0x11c] sm:$0xf]
  %v117 = vld [vmem:[%s3 + $0x120] sm:$0xf]
  %v118 = vld [vmem:[%s3 + $0x124] sm:$0xf]
  %v119 = vld [vmem:[%s3 + $0x128] sm:$0xf]
  %v120 = vld [vmem:[%s3 + $0x12c] sm:$0xf]
  %v121 = vld [vmem:[%s3 + $0x130] sm:$0xf]
  %v122 = vld [vmem:[%s3 + $0x134] sm:$0xf]
  %v123 = vld [vmem:[%s3 + $0x138] sm:$0xf]
  %v124 = vld [vmem:[%s3 + $0x13c] sm:$0xf]
  %v125 = vld [vmem:[%s3 + $0x140] sm:$0xf]
  %v126 = vld [vmem:[%s3 + $0x144] sm:$0xf]
  %v127 = vld [vmem:[%s3 + $0x148] sm:$0xf]
  %v128 = vld [vmem:[%s3 + $0x14c] sm:$0xf]
  %v129 = vld [vmem:[%s3 + $0x150] sm:$0xf]
  %v130 = vld [vmem:[%s3 + $0x154] sm:$0xf]
  %v131 = vld [vmem:[%s3 + $0x158] sm:$0xf]
  %v132 = vld [vmem:[%s3 + $0x15c] sm:$0xf]
  %v133 = vld [vmem:[%s3 + $0x160] sm:$0xf]
  %v134 = vld [vmem:[%s3 + $0x164] sm:$0xf]
  %v135 = vld [vmem:[%s3 + $0x168] sm:$0xf]
  %v136 = vld [vmem:[%s3 + $0x16c] sm:$0xf]
  %v137 = vld [vmem:[%s3 + $0x170] sm:$0xf]
  %v138 = vld [vmem:[%s3 + $0x174] sm:$0xf]
  %v139 = vld [vmem:[%s3 + $0x178] sm:$0xf]
  %v140 = vld [vmem:[%s3 + $0x17c] sm:$0xf]
  %v141 = vld [vmem:[%s4] sm:$0x1]
  %v143 = vlaneseq
  %v144 = vshrl.u32 %v143, 7
  %v145 = vsub.s32 0, %v144
  %v146 = vrot.slane %v141, %v145
  %v154 = vunpack.c.l.b16 %v39
  %v155 = vunpack.c.h.b16 %v39
  %v156 = vunpack.c.l.b16 %v40
  %v157 = vunpack.c.h.b16 %v40
  %v158 = vunpack.c.l.b16 %v41
  %v159 = vunpack.c.h.b16 %v41
  %v160 = vunpack.c.l.b16 %v42
  %v161 = vunpack.c.h.b16 %v42
  %v162 = vunpack.c.l.b16 %v43
  %v163 = vunpack.c.h.b16 %v43
  %v164 = vunpack.c.l.b16 %v44
  %v165 = vunpack.c.h.b16 %v44
  %v166 = vpack.c.b16 %v160, %v154
  %v167 = vpack.c.b16 %v161, %v155
  %v168 = vpack.c.b16 %v162, %v156
  %v169 = vpack.c.b16 %v163, %v157
  %v170 = vpack.c.b16 %v164, %v158
  %v171 = vpack.c.b16 %v165, %v159
  %v274 = vunpack.c.l.b16 %v45
  %v275 = vunpack.c.l.b16 %v46
  %v276 = vunpack.c.l.b16 %v47
  %v277 = vunpack.c.l.b16 %v48
  %v278 = vunpack.c.l.b16 %v49
  %v279 = vunpack.c.l.b16 %v50
  %v280 = vunpack.c.l.b16 %v51
  %v281 = vunpack.c.l.b16 %v52
  %v282 = vunpack.c.l.b16 %v53
  %v283 = vunpack.c.l.b16 %v54
  %v284 = vunpack.c.l.b16 %v55
  %v285 = vunpack.c.l.b16 %v56
  %v286 = vunpack.c.l.b16 %v57
  %v287 = vunpack.c.l.b16 %v58
  %v288 = vunpack.c.l.b16 %v59
  %v289 = vunpack.c.l.b16 %v60
  %v290 = vunpack.c.l.b16 %v61
  %v291 = vunpack.c.l.b16 %v62
  %v292 = vunpack.c.l.b16 %v63
  %v293 = vunpack.c.l.b16 %v64
  %v294 = vunpack.c.l.b16 %v65
  %v295 = vunpack.c.l.b16 %v66
  %v296 = vunpack.c.l.b16 %v67
  %v297 = vunpack.c.l.b16 %v68
  %v298 = vunpack.c.l.b16 %v69
  %v299 = vunpack.c.l.b16 %v70
  %v300 = vunpack.c.l.b16 %v71
  %v301 = vunpack.c.l.b16 %v72
  %v302 = vunpack.c.l.b16 %v73
  %v303 = vunpack.c.l.b16 %v74
  %v304 = vunpack.c.l.b16 %v75
  %v305 = vunpack.c.l.b16 %v76
  %v306 = vunpack.c.l.b16 %v77
  %v307 = vunpack.c.l.b16 %v78
  %v308 = vunpack.c.l.b16 %v79
  %v309 = vunpack.c.l.b16 %v80
  %v310 = vunpack.c.l.b16 %v81
  %v311 = vunpack.c.l.b16 %v82
  %v312 = vunpack.c.l.b16 %v83
  %v313 = vunpack.c.l.b16 %v84
  %v314 = vunpack.c.l.b16 %v85
  %v315 = vunpack.c.l.b16 %v86
  %v316 = vunpack.c.l.b16 %v87
  %v317 = vunpack.c.l.b16 %v88
  %v318 = vunpack.c.l.b16 %v89
  %v319 = vunpack.c.l.b16 %v90
  %v320 = vunpack.c.l.b16 %v91
  %v321 = vunpack.c.l.b16 %v92
  %v322 = vunpack.c.l.b16 %v93
  %v323 = vunpack.c.l.b16 %v94
  %v324 = vunpack.c.l.b16 %v95
  %v325 = vunpack.c.l.b16 %v96
  %v326 = vunpack.c.l.b16 %v97
  %v327 = vunpack.c.l.b16 %v98
  %v328 = vunpack.c.l.b16 %v99
  %v329 = vunpack.c.l.b16 %v100
  %v330 = vunpack.c.l.b16 %v101
  %v331 = vunpack.c.l.b16 %v102
  %v332 = vunpack.c.l.b16 %v103
  %v333 = vunpack.c.l.b16 %v104
  %v334 = vunpack.c.l.b16 %v105
  %v335 = vunpack.c.l.b16 %v106
  %v336 = vunpack.c.l.b16 %v107
  %v337 = vunpack.c.l.b16 %v108
  %v338 = vunpack.c.l.b16 %v109
  %v339 = vunpack.c.l.b16 %v110
  %v340 = vunpack.c.l.b16 %v111
  %v341 = vunpack.c.l.b16 %v112
  %v342 = vunpack.c.l.b16 %v113
  %v343 = vunpack.c.l.b16 %v114
  %v344 = vunpack.c.l.b16 %v115
  %v345 = vunpack.c.l.b16 %v116
  %v346 = vunpack.c.l.b16 %v117
  %v347 = vunpack.c.l.b16 %v118
  %v348 = vunpack.c.l.b16 %v119
  %v349 = vunpack.c.l.b16 %v120
  %v350 = vunpack.c.l.b16 %v121
  %v351 = vunpack.c.l.b16 %v122
  %v352 = vunpack.c.l.b16 %v123
  %v353 = vunpack.c.l.b16 %v124
  %v354 = vunpack.c.l.b16 %v125
  %v355 = vunpack.c.l.b16 %v126
  %v356 = vunpack.c.l.b16 %v127
  %v357 = vunpack.c.l.b16 %v128
  %v358 = vunpack.c.l.b16 %v129
  %v359 = vunpack.c.l.b16 %v130
  %v360 = vunpack.c.l.b16 %v131
  %v361 = vunpack.c.l.b16 %v132
  %v362 = vunpack.c.l.b16 %v133
  %v363 = vunpack.c.l.b16 %v134
  %v364 = vunpack.c.l.b16 %v135
  %v365 = vunpack.c.l.b16 %v136
  %v366 = vunpack.c.l.b16 %v137
  %v367 = vunpack.c.l.b16 %v138
  %v368 = vunpack.c.l.b16 %v139
  %v369 = vunpack.c.l.b16 %v140
  %v370 = vpack.c.b16 %v275, %v274
  %v371 = vpack.c.b16 %v277, %v276
  %v372 = vpack.c.b16 %v279, %v278
  %v373 = vpack.c.b16 %v281, %v280
  %v374 = vpack.c.b16 %v283, %v282
  %v375 = vpack.c.b16 %v285, %v284
  %v376 = vpack.c.b16 %v287, %v286
  %v377 = vpack.c.b16 %v289, %v288
  %v378 = vpack.c.b16 %v291, %v290
  %v379 = vpack.c.b16 %v293, %v292
  %v380 = vpack.c.b16 %v295, %v294
  %v381 = vpack.c.b16 %v297, %v296
  %v382 = vpack.c.b16 %v299, %v298
  %v383 = vpack.c.b16 %v301, %v300
  %v384 = vpack.c.b16 %v303, %v302
  %v385 = vpack.c.b16 %v305, %v304
  %v386 = vpack.c.b16 %v307, %v306
  %v387 = vpack.c.b16 %v309, %v308
  %v388 = vpack.c.b16 %v311, %v310
  %v389 = vpack.c.b16 %v313, %v312
  %v390 = vpack.c.b16 %v315, %v314
  %v391 = vpack.c.b16 %v317, %v316
  %v392 = vpack.c.b16 %v319, %v318
  %v393 = vpack.c.b16 %v321, %v320
  %v394 = vpack.c.b16 %v323, %v322
  %v395 = vpack.c.b16 %v325, %v324
  %v396 = vpack.c.b16 %v327, %v326
  %v397 = vpack.c.b16 %v329, %v328
  %v398 = vpack.c.b16 %v331, %v330
  %v399 = vpack.c.b16 %v333, %v332
  %v400 = vpack.c.b16 %v335, %v334
  %v401 = vpack.c.b16 %v337, %v336
  %v402 = vpack.c.b16 %v339, %v338
  %v403 = vpack.c.b16 %v341, %v340
  %v404 = vpack.c.b16 %v343, %v342
  %v405 = vpack.c.b16 %v345, %v344
  %v406 = vpack.c.b16 %v347, %v346
  %v407 = vpack.c.b16 %v349, %v348
  %v408 = vpack.c.b16 %v351, %v350
  %v409 = vpack.c.b16 %v353, %v352
  %v410 = vpack.c.b16 %v355, %v354
  %v411 = vpack.c.b16 %v357, %v356
  %v412 = vpack.c.b16 %v359, %v358
  %v413 = vpack.c.b16 %v361, %v360
  %v414 = vpack.c.b16 %v363, %v362
  %v415 = vpack.c.b16 %v365, %v364
  %v416 = vpack.c.b16 %v367, %v366
  %v417 = vpack.c.b16 %v369, %v368
  %466 = vmatprep.subr.bf16.mxu0 0
  %467 = vmatpush1.bf16.msra.mxu0 %v377
  %468 = vmatprep.subr.bf16.mxu0 0
  %469 = vmatpush1.bf16.msra.mxu0 %v376
  %470 = vmatprep.subr.bf16.mxu0 0
  %471 = vmatpush1.bf16.msra.mxu0 %v375
  %472 = vmatprep.subr.bf16.mxu0 0
  %473 = vmatpush1.bf16.msra.mxu0 %v374
  %474 = vmatprep.subr.bf16.mxu0 0
  %475 = vmatpush1.bf16.msra.mxu0 %v373
  %476 = vmatprep.subr.bf16.mxu0 0
  %477 = vmatpush1.bf16.msra.mxu0 %v372
  %478 = vmatprep.subr.bf16.mxu0 0
  %479 = vmatpush1.bf16.msra.mxu0 %v371
  %480 = vmatprep.subr.bf16.mxu0 0
  %481 = vmatpush1.bf16.msra.mxu0 %v370
  %482 = vmatprep.subr.bf16.mxu0 0
  %483 = vmatpush2.bf16.msra.mxu0 %v385
  %484 = vmatprep.subr.bf16.mxu0 0
  %485 = vmatpush2.bf16.msra.mxu0 %v384
  %486 = vmatprep.subr.bf16.mxu0 0
  %487 = vmatpush2.bf16.msra.mxu0 %v383
  %488 = vmatprep.subr.bf16.mxu0 0
  %489 = vmatpush2.bf16.msra.mxu0 %v382
  %490 = vmatprep.subr.bf16.mxu0 0
  %491 = vmatpush2.bf16.msra.mxu0 %v381
  %492 = vmatprep.subr.bf16.mxu0 0
  %493 = vmatpush2.bf16.msra.mxu0 %v380
  %494 = vmatprep.subr.bf16.mxu0 0
  %495 = vmatpush2.bf16.msra.mxu0 %v379
  %496 = vmatprep.subr.bf16.mxu0 0
  %497 = vmatpush2.bf16.msra.mxu0 %v378
  %498 = vmatprep.mubr.bf16.mxu0 %v167
  %499 = vmatmul.mubr.bf16.gmra.mxu0 %v166
  %v500 = vpop.f32.mrf.mxu0
  %v501 = vadd.f32 %v146, %v500
  %v502 = vpop.f32.mrf.mxu0
  %v503 = vpop.f32.mrf.mxu0
  %v504 = vadd.f32 %v146, %v503
  %v505 = vpop.f32.mrf.mxu0
  %506 = vdwg.mxu0
  %507 = vmatprep.subr.bf16.mxu0 0
  %508 = vmatpush1.bf16.msra.mxu0 %v393
  %509 = vmatprep.subr.bf16.mxu0 0
  %510 = vmatpush1.bf16.msra.mxu0 %v392
  %511 = vmatprep.subr.bf16.mxu0 0
  %512 = vmatpush1.bf16.msra.mxu0 %v391
  %513 = vmatprep.subr.bf16.mxu0 0
  %514 = vmatpush1.bf16.msra.mxu0 %v390
  %515 = vmatprep.subr.bf16.mxu0 0
  %516 = vmatpush1.bf16.msra.mxu0 %v389
  %517 = vmatprep.subr.bf16.mxu0 0
  %518 = vmatpush1.bf16.msra.mxu0 %v388
  %519 = vmatprep.subr.bf16.mxu0 0
  %520 = vmatpush1.bf16.msra.mxu0 %v387
  %521 = vmatprep.subr.bf16.mxu0 0
  %522 = vmatpush1.bf16.msra.mxu0 %v386
  %523 = vmatprep.subr.bf16.mxu0 0
  %524 = vmatpush2.bf16.msra.mxu0 %v401
  %525 = vmatprep.subr.bf16.mxu0 0
  %526 = vmatpush2.bf16.msra.mxu0 %v400
  %527 = vmatprep.subr.bf16.mxu0 0
  %528 = vmatpush2.bf16.msra.mxu0 %v399
  %529 = vmatprep.subr.bf16.mxu0 0
  %530 = vmatpush2.bf16.msra.mxu0 %v398
  %531 = vmatprep.subr.bf16.mxu0 0
  %532 = vmatpush2.bf16.msra.mxu0 %v397
  %533 = vmatprep.subr.bf16.mxu0 0
  %534 = vmatpush2.bf16.msra.mxu0 %v396
  %535 = vmatprep.subr.bf16.mxu0 0
  %536 = vmatpush2.bf16.msra.mxu0 %v395
  %537 = vmatprep.subr.bf16.mxu0 0
  %538 = vmatpush2.bf16.msra.mxu0 %v394
  %539 = vmatprep.mubr.bf16.mxu0 %v169
  %540 = vmatmul.mubr.bf16.gmra.mxu0 %v168
  %v541 = vpop.f32.mrf.mxu0
  %v542 = vadd.f32 %v501, %v541
  %v543 = vpop.f32.mrf.mxu0
  %v544 = vpop.f32.mrf.mxu0
  %v545 = vadd.f32 %v504, %v544
  %v546 = vpop.f32.mrf.mxu0
  %547 = vdwg.mxu0
  %548 = vmatprep.subr.bf16.mxu0 0
  %549 = vmatpush1.bf16.msra.mxu0 %v409
  %550 = vmatprep.subr.bf16.mxu0 0
  %551 = vmatpush1.bf16.msra.mxu0 %v408
  %552 = vmatprep.subr.bf16.mxu0 0
  %553 = vmatpush1.bf16.msra.mxu0 %v407
  %554 = vmatprep.subr.bf16.mxu0 0
  %555 = vmatpush1.bf16.msra.mxu0 %v406
  %556 = vmatprep.subr.bf16.mxu0 0
  %557 = vmatpush1.bf16.msra.mxu0 %v405
  %558 = vmatprep.subr.bf16.mxu0 0
  %559 = vmatpush1.bf16.msra.mxu0 %v404
  %560 = vmatprep.subr.bf16.mxu0 0
  %561 = vmatpush1.bf16.msra.mxu0 %v403
  %562 = vmatprep.subr.bf16.mxu0 0
  %563 = vmatpush1.bf16.msra.mxu0 %v402
  %564 = vmatprep.subr.bf16.mxu0 0
  %565 = vmatpush2.bf16.msra.mxu0 %v417
  %566 = vmatprep.subr.bf16.mxu0 0
  %567 = vmatpush2.bf16.msra.mxu0 %v416
  %568 = vmatprep.subr.bf16.mxu0 0
  %569 = vmatpush2.bf16.msra.mxu0 %v415
  %570 = vmatprep.subr.bf16.mxu0 0
  %571 = vmatpush2.bf16.msra.mxu0 %v414
  %572 = vmatprep.subr.bf16.mxu0 0
  %573 = vmatpush2.bf16.msra.mxu0 %v413
  %574 = vmatprep.subr.bf16.mxu0 0
  %575 = vmatpush2.bf16.msra.mxu0 %v412
  %576 = vmatprep.subr.bf16.mxu0 0
  %577 = vmatpush2.bf16.msra.mxu0 %v411
  %578 = vmatprep.subr.bf16.mxu0 0
  %579 = vmatpush2.bf16.msra.mxu0 %v410
  %580 = vmatprep.mubr.bf16.mxu0 %v171
  %581 = vmatmul.mubr.bf16.gmra.mxu0 %v170
  %v582 = vpop.f32.mrf.mxu0
  %v583 = vadd.f32 %v542, %v582
  %v584 = vpop.f32.mrf.mxu0
  %v585 = vpop.f32.mrf.mxu0
  %v586 = vadd.f32 %v545, %v585
  %v587 = vpop.f32.mrf.mxu0
  %588 = vdwg.mxu0
  %v589 = vmax.f32 %v583, 0.0
  %v590 = vmax.f32 %v586, 0.0
  %v591 = vld [vmem:[%s1] sm:$0xf]
  %v592 = vld [vmem:[%s1 + $0x4] sm:$0xf]
  %v593 = vld [vmem:[%s5] sm:$0xf]
  %v594 = vld [vmem:[%s5 + $0x4] sm:$0xf]
  %v595 = vld [vmem:[%s5 + $0x8] sm:$0xf]
  %v596 = vld [vmem:[%s5 + $0xc] sm:$0xf]
  %v597 = vld [vmem:[%s5 + $0x10] sm:$0xf]
  %v598 = vld [vmem:[%s5 + $0x14] sm:$0xf]
  %v599 = vld [vmem:[%s5 + $0x18] sm:$0xf]
  %v600 = vld [vmem:[%s5 + $0x1c] sm:$0xf]
  %v603 = vunpack.c.l.b16 %v591
  %v604 = vunpack.c.l.b16 %v592
  %v605 = vpack.c.b16 %v604, %v603
  %v614 = vunpack.c.l.b16 %v593
  %v615 = vunpack.c.l.b16 %v594
  %v616 = vunpack.c.l.b16 %v595
  %v617 = vunpack.c.l.b16 %v596
  %v618 = vunpack.c.l.b16 %v597
  %v619 = vunpack.c.l.b16 %v598
  %v620 = vunpack.c.l.b16 %v599
  %v621 = vunpack.c.l.b16 %v600
  %v622 = vpack.c.b16 %v615, %v614
  %v623 = vpack.c.b16 %v617, %v616
  %v624 = vpack.c.b16 %v619, %v618
  %v625 = vpack.c.b16 %v621, %v620
  %vm630 = vcmask 523264
  %v632 = vsel %vm630, %v605, 0
  %634 = vmatprep.subr.bf16.mxu0 0
  %635 = vmatpush1.bf16.msra.mxu0 0
  %636 = vmatprep.subr.bf16.mxu0 0
  %637 = vmatpush1.bf16.msra.mxu0 0
  %638 = vmatprep.subr.bf16.mxu0 0
  %639 = vmatpush1.bf16.msra.mxu0 0
  %640 = vmatprep.subr.bf16.mxu0 0
  %641 = vmatpush1.bf16.msra.mxu0 0
  %642 = vmatprep.subr.bf16.mxu0 0
  %643 = vmatpush1.bf16.msra.mxu0 %v625
  %644 = vmatprep.subr.bf16.mxu0 0
  %645 = vmatpush1.bf16.msra.mxu0 %v624
  %646 = vmatprep.subr.bf16.mxu0 0
  %647 = vmatpush1.bf16.msra.mxu0 %v623
  %648 = vmatprep.subr.bf16.mxu0 0
  %649 = vmatpush1.bf16.msra.mxu0 %v622
  %650 = vmatprep.subr.bf16.mxu0 0
  %651 = vmatpush2.bf16.msra.mxu0 0
  %652 = vmatprep.subr.bf16.mxu0 0
  %653 = vmatpush2.bf16.msra.mxu0 0
  %654 = vmatprep.subr.bf16.mxu0 0
  %655 = vmatpush2.bf16.msra.mxu0 0
  %656 = vmatprep.subr.bf16.mxu0 0
  %657 = vmatpush2.bf16.msra.mxu0 0
  %658 = vmatprep.subr.bf16.mxu0 0
  %659 = vmatpush2.bf16.msra.mxu0 0
  %660 = vmatprep.subr.bf16.mxu0 0
  %661 = vmatpush2.bf16.msra.mxu0 0
  %662 = vmatprep.subr.bf16.mxu0 0
  %663 = vmatpush2.bf16.msra.mxu0 0
  %664 = vmatprep.subr.bf16.mxu0 0
  %665 = vmatpush2.bf16.msra.mxu0 0
  %666 = vmatprep.mubr.bf16.mxu0 0
  %667 = vmatmul.mubr.bf16.gmra.mxu0 %v632
  %v668 = vpop.f32.mrf.mxu0
  %v669 = vadd.f32 0.0, %v668
  %v670 = vpop.f32.mrf.mxu0
  %v671 = vpop.f32.mrf.mxu0
  %v672 = vadd.f32 0.0, %v671
  %v673 = vpop.f32.mrf.mxu0
  %674 = vdwg.mxu0
  %v675 = vld [vmem:[%s2] sm:$0xf]
  %v676 = vld [vmem:[%s2 + $0x4] sm:$0xf]
  %v677 = vld [vmem:[%s6] sm:$0xf]
  %v678 = vld [vmem:[%s6 + $0x4] sm:$0xf]
  %v679 = vld [vmem:[%s6 + $0x8] sm:$0xf]
  %v680 = vld [vmem:[%s6 + $0xc] sm:$0xf]
  %v681 = vld [vmem:[%s6 + $0x10] sm:$0xf]
  %v682 = vld [vmem:[%s6 + $0x14] sm:$0xf]
  %v683 = vld [vmem:[%s6 + $0x18] sm:$0xf]
  %v684 = vld [vmem:[%s6 + $0x1c] sm:$0xf]
  %v687 = vunpack.c.l.b16 %v675
  %v688 = vunpack.c.l.b16 %v676
  %v689 = vpack.c.b16 %v688, %v687
  %v698 = vunpack.c.l.b16 %v677
  %v699 = vunpack.c.l.b16 %v678
  %v700 = vunpack.c.l.b16 %v679
  %v701 = vunpack.c.l.b16 %v680
  %v702 = vunpack.c.l.b16 %v681
  %v703 = vunpack.c.l.b16 %v682
  %v704 = vunpack.c.l.b16 %v683
  %v705 = vunpack.c.l.b16 %v684
  %v706 = vpack.c.b16 %v699, %v698
  %v707 = vpack.c.b16 %v701, %v700
  %v708 = vpack.c.b16 %v703, %v702
  %v709 = vpack.c.b16 %v705, %v704
  %v715 = vsel %vm630, %v689, 0
  %717 = vmatprep.subr.bf16.mxu0 0
  %718 = vmatpush1.bf16.msra.mxu0 0
  %719 = vmatprep.subr.bf16.mxu0 0
  %720 = vmatpush1.bf16.msra.mxu0 0
  %721 = vmatprep.subr.bf16.mxu0 0
  %722 = vmatpush1.bf16.msra.mxu0 0
  %723 = vmatprep.subr.bf16.mxu0 0
  %724 = vmatpush1.bf16.msra.mxu0 0
  %725 = vmatprep.subr.bf16.mxu0 0
  %726 = vmatpush1.bf16.msra.mxu0 %v709
  %727 = vmatprep.subr.bf16.mxu0 0
  %728 = vmatpush1.bf16.msra.mxu0 %v708
  %729 = vmatprep.subr.bf16.mxu0 0
  %730 = vmatpush1.bf16.msra.mxu0 %v707
  %731 = vmatprep.subr.bf16.mxu0 0
  %732 = vmatpush1.bf16.msra.mxu0 %v706
  %733 = vmatprep.subr.bf16.mxu0 0
  %734 = vmatpush2.bf16.msra.mxu0 0
  %735 = vmatprep.subr.bf16.mxu0 0
  %736 = vmatpush2.bf16.msra.mxu0 0
  %737 = vmatprep.subr.bf16.mxu0 0
  %738 = vmatpush2.bf16.msra.mxu0 0
  %739 = vmatprep.subr.bf16.mxu0 0
  %740 = vmatpush2.bf16.msra.mxu0 0
  %741 = vmatprep.subr.bf16.mxu0 0
  %742 = vmatpush2.bf16.msra.mxu0 0
  %743 = vmatprep.subr.bf16.mxu0 0
  %744 = vmatpush2.bf16.msra.mxu0 0
  %745 = vmatprep.subr.bf16.mxu0 0
  %746 = vmatpush2.bf16.msra.mxu0 0
  %747 = vmatprep.subr.bf16.mxu0 0
  %748 = vmatpush2.bf16.msra.mxu0 0
  %749 = vmatprep.mubr.bf16.mxu0 0
  %750 = vmatmul.mubr.bf16.gmra.mxu0 %v715
  %v751 = vpop.f32.mrf.mxu0
  %v752 = vadd.f32 0.0, %v751
  %v753 = vpop.f32.mrf.mxu0
  %v754 = vpop.f32.mrf.mxu0
  %v755 = vadd.f32 0.0, %v754
  %v756 = vpop.f32.mrf.mxu0
  %757 = vdwg.mxu0
  %v758 = vpack.c.bf16 %v590, %v589
  %v760 = vunpack.c.l.b16 %v758
  %v761 = vunpack.c.h.b16 %v758
  %v762 = vpack.c.b16 %v760, %v760
  %v763 = vpack.c.b16 %v761, %v761
  %766 = vst [vmem:[#allocation2] sm:$0xf] %v762
  %767 = vst [vmem:[#allocation2 + $0xc] sm:$0xf] %v763
  %v768 = vpack.c.bf16 %v672, %v669
  %v770 = vunpack.c.l.b16 %v768
  %v771 = vunpack.c.h.b16 %v768
  %v772 = vpack.c.b16 %v770, %v770
  %v773 = vpack.c.b16 %v771, %v771
  %776 = vst [vmem:[#allocation2 + $0x4] sm:$0xf] %v772
  %777 = vst [vmem:[#allocation2 + $0x10] sm:$0xf] %v773
  %v778 = vpack.c.bf16 %v755, %v752
  %v780 = vunpack.c.l.b16 %v778
  %v781 = vunpack.c.h.b16 %v778
  %v782 = vpack.c.b16 %v780, %v780
  %v783 = vpack.c.b16 %v781, %v781
  %786 = vst [vmem:[#allocation2 + $0x8] sm:$0xf] %v782
  %787 = vst [vmem:[#allocation2 + $0x14] sm:$0xf] %v783
  %v788 = vld [vmem:[#allocation2] sm:$0xff]
  %v789 = vld [vmem:[#allocation2 + $0x8] sm:$0xf]
  %v790 = vld [vmem:[#allocation2 + $0xc] sm:$0xff]
  %v791 = vld [vmem:[#allocation2 + $0x14] sm:$0xf]
  %v792 = vld [vmem:[%s7] sm:$0xff]
  %v793 = vld [vmem:[%s7 + $0x8] sm:$0xff]
  %v794 = vld [vmem:[%s7 + $0x10] sm:$0xff]
  %v795 = vld [vmem:[%s7 + $0x18] sm:$0xff]
  %v796 = vld [vmem:[%s7 + $0x20] sm:$0xff]
  %v797 = vld [vmem:[%s7 + $0x28] sm:$0xff]
  %v798 = vld [vmem:[%s7 + $0x30] sm:$0xff]
  %v799 = vld [vmem:[%s7 + $0x38] sm:$0xff]
  %v800 = vld [vmem:[%s7 + $0x40] sm:$0xff]
  %v801 = vld [vmem:[%s7 + $0x48] sm:$0xff]
  %v802 = vld [vmem:[%s7 + $0x50] sm:$0xff]
  %v803 = vld [vmem:[%s7 + $0x58] sm:$0xff]
  %v804 = vld [vmem:[%s7 + $0x60] sm:$0xff]
  %v805 = vld [vmem:[%s7 + $0x68] sm:$0xff]
  %v806 = vld [vmem:[%s7 + $0x70] sm:$0xff]
  %v807 = vld [vmem:[%s7 + $0x78] sm:$0xff]
  %v808 = vld [vmem:[%s7 + $0x80] sm:$0xff]
  %v809 = vld [vmem:[%s7 + $0x88] sm:$0xff]
  %v810 = vld [vmem:[%s7 + $0x90] sm:$0xff]
  %v811 = vld [vmem:[%s7 + $0x98] sm:$0xff]
  %v812 = vld [vmem:[%s7 + $0xa0] sm:$0xff]
  %v813 = vld [vmem:[%s7 + $0xa8] sm:$0xff]
  %v814 = vld [vmem:[%s7 + $0xb0] sm:$0xff]
  %v815 = vld [vmem:[%s7 + $0xb8] sm:$0xff]
  %v816 = vld [vmem:[%s7 + $0xc0] sm:$0xff]
  %v817 = vld [vmem:[%s7 + $0xc8] sm:$0xff]
  %v818 = vld [vmem:[%s7 + $0xd0] sm:$0xff]
  %v819 = vld [vmem:[%s7 + $0xd8] sm:$0xff]
  %v820 = vld [vmem:[%s7 + $0xe0] sm:$0xff]
  %v821 = vld [vmem:[%s7 + $0xe8] sm:$0xff]
  %v822 = vld [vmem:[%s7 + $0xf0] sm:$0xff]
  %v823 = vld [vmem:[%s7 + $0xf8] sm:$0xff]
  %v824 = vld [vmem:[%s7 + $0x100] sm:$0xff]
  %v825 = vld [vmem:[%s7 + $0x108] sm:$0xff]
  %v826 = vld [vmem:[%s7 + $0x110] sm:$0xff]
  %v827 = vld [vmem:[%s7 + $0x118] sm:$0xff]
  %v828 = vld [vmem:[%s7 + $0x120] sm:$0xff]
  %v829 = vld [vmem:[%s7 + $0x128] sm:$0xff]
  %v830 = vld [vmem:[%s7 + $0x130] sm:$0xff]
  %v831 = vld [vmem:[%s7 + $0x138] sm:$0xff]
  %v832 = vld [vmem:[%s7 + $0x140] sm:$0xff]
  %v833 = vld [vmem:[%s7 + $0x148] sm:$0xff]
  %v834 = vld [vmem:[%s7 + $0x150] sm:$0xff]
  %v835 = vld [vmem:[%s7 + $0x158] sm:$0xff]
  %v836 = vld [vmem:[%s7 + $0x160] sm:$0xff]
  %v837 = vld [vmem:[%s7 + $0x168] sm:$0xff]
  %v838 = vld [vmem:[%s7 + $0x170] sm:$0xff]
  %v839 = vld [vmem:[%s7 + $0x178] sm:$0xff]
  %v840 = vld [vmem:[%s7 + $0x180] sm:$0xff]
  %v841 = vld [vmem:[%s7 + $0x188] sm:$0xff]
  %v842 = vld [vmem:[%s7 + $0x190] sm:$0xff]
  %v843 = vld [vmem:[%s7 + $0x198] sm:$0xff]
  %v844 = vld [vmem:[%s7 + $0x1a0] sm:$0xff]
  %v845 = vld [vmem:[%s7 + $0x1a8] sm:$0xff]
  %v846 = vld [vmem:[%s7 + $0x1b0] sm:$0xff]
  %v847 = vld [vmem:[%s7 + $0x1b8] sm:$0xff]
  %v848 = vld [vmem:[%s7 + $0x1c0] sm:$0xff]
  %v849 = vld [vmem:[%s7 + $0x1c8] sm:$0xff]
  %v850 = vld [vmem:[%s7 + $0x1d0] sm:$0xff]
  %v851 = vld [vmem:[%s7 + $0x1d8] sm:$0xff]
  %v852 = vld [vmem:[%s7 + $0x1e0] sm:$0xff]
  %v853 = vld [vmem:[%s7 + $0x1e8] sm:$0xff]
  %v854 = vld [vmem:[%s7 + $0x1f0] sm:$0xff]
  %v855 = vld [vmem:[%s7 + $0x1f8] sm:$0xff]
  %v856 = vld [vmem:[%s7 + $0x200] sm:$0xff]
  %v857 = vld [vmem:[%s7 + $0x208] sm:$0xff]
  %v858 = vld [vmem:[%s7 + $0x210] sm:$0xff]
  %v859 = vld [vmem:[%s7 + $0x218] sm:$0xff]
  %v860 = vld [vmem:[%s7 + $0x220] sm:$0xff]
  %v861 = vld [vmem:[%s7 + $0x228] sm:$0xff]
  %v862 = vld [vmem:[%s7 + $0x230] sm:$0xff]
  %v863 = vld [vmem:[%s7 + $0x238] sm:$0xff]
  %v864 = vld [vmem:[%s7 + $0x240] sm:$0xff]
  %v865 = vld [vmem:[%s7 + $0x248] sm:$0xff]
  %v866 = vld [vmem:[%s7 + $0x250] sm:$0xff]
  %v867 = vld [vmem:[%s7 + $0x258] sm:$0xff]
  %v868 = vld [vmem:[%s7 + $0x260] sm:$0xff]
  %v869 = vld [vmem:[%s7 + $0x268] sm:$0xff]
  %v870 = vld [vmem:[%s7 + $0x270] sm:$0xff]
  %v871 = vld [vmem:[%s7 + $0x278] sm:$0xff]
  %v872 = vld [vmem:[%s7 + $0x280] sm:$0xff]
  %v873 = vld [vmem:[%s7 + $0x288] sm:$0xff]
  %v874 = vld [vmem:[%s7 + $0x290] sm:$0xff]
  %v875 = vld [vmem:[%s7 + $0x298] sm:$0xff]
  %v876 = vld [vmem:[%s7 + $0x2a0] sm:$0xff]
  %v877 = vld [vmem:[%s7 + $0x2a8] sm:$0xff]
  %v878 = vld [vmem:[%s7 + $0x2b0] sm:$0xff]
  %v879 = vld [vmem:[%s7 + $0x2b8] sm:$0xff]
  %v880 = vld [vmem:[%s7 + $0x2c0] sm:$0xff]
  %v881 = vld [vmem:[%s7 + $0x2c8] sm:$0xff]
  %v882 = vld [vmem:[%s7 + $0x2d0] sm:$0xff]
  %v883 = vld [vmem:[%s7 + $0x2d8] sm:$0xff]
  %v884 = vld [vmem:[%s7 + $0x2e0] sm:$0xff]
  %v885 = vld [vmem:[%s7 + $0x2e8] sm:$0xff]
  %v886 = vld [vmem:[%s7 + $0x2f0] sm:$0xff]
  %v887 = vld [vmem:[%s7 + $0x2f8] sm:$0xff]
  %v888 = vld [vmem:[%s8] sm:$0xf]
  %v890 = vlaneseq
  %v891 = vshrl.u32 %v890, 7
  %v892 = vsub.s32 0, %v891
  %v893 = vrot.slane %v888, %v892
  %v894 = vlaneseq
  %v895 = vshrl.u32 %v894, 7
  %v896 = vsub.s32 1, %v895
  %v897 = vrot.slane %v888, %v896
  %v898 = vlaneseq
  %v899 = vshrl.u32 %v898, 7
  %v900 = vsub.s32 2, %v899
  %v901 = vrot.slane %v888, %v900
  %v902 = vlaneseq
  %v903 = vshrl.u32 %v902, 7
  %v904 = vsub.s32 3, %v903
  %v905 = vrot.slane %v888, %v904
  %v914 = vunpack.c.l.b16 %v788
  %v915 = vunpack.c.h.b16 %v788
  %v916 = vunpack.c.l.b16 %v789
  %v917 = vunpack.c.l.b16 %v790
  %v918 = vunpack.c.h.b16 %v790
  %v919 = vunpack.c.l.b16 %v791
  %v920 = vpack.c.b16 %v917, %v914
  %v921 = vpack.c.b16 %v918, %v915
  %v922 = vpack.c.b16 %v919, %v916
  %v1022 = vunpack.c.l.b16 %v792
  %v1023 = vunpack.c.h.b16 %v792
  %v1024 = vunpack.c.l.b16 %v793
  %v1025 = vunpack.c.h.b16 %v793
  %v1026 = vunpack.c.l.b16 %v794
  %v1027 = vunpack.c.h.b16 %v794
  %v1028 = vunpack.c.l.b16 %v795
  %v1029 = vunpack.c.h.b16 %v795
  %v1030 = vunpack.c.l.b16 %v796
  %v1031 = vunpack.c.h.b16 %v796
  %v1032 = vunpack.c.l.b16 %v797
  %v1033 = vunpack.c.h.b16 %v797
  %v1034 = vunpack.c.l.b16 %v798
  %v1035 = vunpack.c.h.b16 %v798
  %v1036 = vunpack.c.l.b16 %v799
  %v1037 = vunpack.c.h.b16 %v799
  %v1038 = vunpack.c.l.b16 %v800
  %v1039 = vunpack.c.h.b16 %v800
  %v1040 = vunpack.c.l.b16 %v801
  %v1041 = vunpack.c.h.b16 %v801
  %v1042 = vunpack.c.l.b16 %v802
  %v1043 = vunpack.c.h.b16 %v802
  %v1044 = vunpack.c.l.b16 %v803
  %v1045 = vunpack.c.h.b16 %v803
  %v1046 = vunpack.c.l.b16 %v804
  %v1047 = vunpack.c.h.b16 %v804
  %v1048 = vunpack.c.l.b16 %v805
  %v1049 = vunpack.c.h.b16 %v805
  %v1050 = vunpack.c.l.b16 %v806
  %v1051 = vunpack.c.h.b16 %v806
  %v1052 = vunpack.c.l.b16 %v807
  %v1053 = vunpack.c.h.b16 %v807
  %v1054 = vunpack.c.l.b16 %v808
  %v1055 = vunpack.c.h.b16 %v808
  %v1056 = vunpack.c.l.b16 %v809
  %v1057 = vunpack.c.h.b16 %v809
  %v1058 = vunpack.c.l.b16 %v810
  %v1059 = vunpack.c.h.b16 %v810
  %v1060 = vunpack.c.l.b16 %v811
  %v1061 = vunpack.c.h.b16 %v811
  %v1062 = vunpack.c.l.b16 %v812
  %v1063 = vunpack.c.h.b16 %v812
  %v1064 = vunpack.c.l.b16 %v813
  %v1065 = vunpack.c.h.b16 %v813
  %v1066 = vunpack.c.l.b16 %v814
  %v1067 = vunpack.c.h.b16 %v814
  %v1068 = vunpack.c.l.b16 %v815
  %v1069 = vunpack.c.h.b16 %v815
  %v1070 = vunpack.c.l.b16 %v816
  %v1071 = vunpack.c.h.b16 %v816
  %v1072 = vunpack.c.l.b16 %v817
  %v1073 = vunpack.c.h.b16 %v817
  %v1074 = vunpack.c.l.b16 %v818
  %v1075 = vunpack.c.h.b16 %v818
  %v1076 = vunpack.c.l.b16 %v819
  %v1077 = vunpack.c.h.b16 %v819
  %v1078 = vunpack.c.l.b16 %v820
  %v1079 = vunpack.c.h.b16 %v820
  %v1080 = vunpack.c.l.b16 %v821
  %v1081 = vunpack.c.h.b16 %v821
  %v1082 = vunpack.c.l.b16 %v822
  %v1083 = vunpack.c.h.b16 %v822
  %v1084 = vunpack.c.l.b16 %v823
  %v1085 = vunpack.c.h.b16 %v823
  %v1086 = vunpack.c.l.b16 %v824
  %v1087 = vunpack.c.h.b16 %v824
  %v1088 = vunpack.c.l.b16 %v825
  %v1089 = vunpack.c.h.b16 %v825
  %v1090 = vunpack.c.l.b16 %v826
  %v1091 = vunpack.c.h.b16 %v826
  %v1092 = vunpack.c.l.b16 %v827
  %v1093 = vunpack.c.h.b16 %v827
  %v1094 = vunpack.c.l.b16 %v828
  %v1095 = vunpack.c.h.b16 %v828
  %v1096 = vunpack.c.l.b16 %v829
  %v1097 = vunpack.c.h.b16 %v829
  %v1098 = vunpack.c.l.b16 %v830
  %v1099 = vunpack.c.h.b16 %v830
  %v1100 = vunpack.c.l.b16 %v831
  %v1101 = vunpack.c.h.b16 %v831
  %v1102 = vunpack.c.l.b16 %v832
  %v1103 = vunpack.c.h.b16 %v832
  %v1104 = vunpack.c.l.b16 %v833
  %v1105 = vunpack.c.h.b16 %v833
  %v1106 = vunpack.c.l.b16 %v834
  %v1107 = vunpack.c.h.b16 %v834
  %v1108 = vunpack.c.l.b16 %v835
  %v1109 = vunpack.c.h.b16 %v835
  %v1110 = vunpack.c.l.b16 %v836
  %v1111 = vunpack.c.h.b16 %v836
  %v1112 = vunpack.c.l.b16 %v837
  %v1113 = vunpack.c.h.b16 %v837
  %v1114 = vunpack.c.l.b16 %v838
  %v1115 = vunpack.c.h.b16 %v838
  %v1116 = vunpack.c.l.b16 %v839
  %v1117 = vunpack.c.h.b16 %v839
  %v1118 = vunpack.c.l.b16 %v840
  %v1119 = vunpack.c.h.b16 %v840
  %v1120 = vunpack.c.l.b16 %v841
  %v1121 = vunpack.c.h.b16 %v841
  %v1122 = vunpack.c.l.b16 %v842
  %v1123 = vunpack.c.h.b16 %v842
  %v1124 = vunpack.c.l.b16 %v843
  %v1125 = vunpack.c.h.b16 %v843
  %v1126 = vunpack.c.l.b16 %v844
  %v1127 = vunpack.c.h.b16 %v844
  %v1128 = vunpack.c.l.b16 %v845
  %v1129 = vunpack.c.h.b16 %v845
  %v1130 = vunpack.c.l.b16 %v846
  %v1131 = vunpack.c.h.b16 %v846
  %v1132 = vunpack.c.l.b16 %v847
  %v1133 = vunpack.c.h.b16 %v847
  %v1134 = vunpack.c.l.b16 %v848
  %v1135 = vunpack.c.h.b16 %v848
  %v1136 = vunpack.c.l.b16 %v849
  %v1137 = vunpack.c.h.b16 %v849
  %v1138 = vunpack.c.l.b16 %v850
  %v1139 = vunpack.c.h.b16 %v850
  %v1140 = vunpack.c.l.b16 %v851
  %v1141 = vunpack.c.h.b16 %v851
  %v1142 = vunpack.c.l.b16 %v852
  %v1143 = vunpack.c.h.b16 %v852
  %v1144 = vunpack.c.l.b16 %v853
  %v1145 = vunpack.c.h.b16 %v853
  %v1146 = vunpack.c.l.b16 %v854
  %v1147 = vunpack.c.h.b16 %v854
  %v1148 = vunpack.c.l.b16 %v855
  %v1149 = vunpack.c.h.b16 %v855
  %v1150 = vunpack.c.l.b16 %v856
  %v1151 = vunpack.c.h.b16 %v856
  %v1152 = vunpack.c.l.b16 %v857
  %v1153 = vunpack.c.h.b16 %v857
  %v1154 = vunpack.c.l.b16 %v858
  %v1155 = vunpack.c.h.b16 %v858
  %v1156 = vunpack.c.l.b16 %v859
  %v1157 = vunpack.c.h.b16 %v859
  %v1158 = vunpack.c.l.b16 %v860
  %v1159 = vunpack.c.h.b16 %v860
  %v1160 = vunpack.c.l.b16 %v861
  %v1161 = vunpack.c.h.b16 %v861
  %v1162 = vunpack.c.l.b16 %v862
  %v1163 = vunpack.c.h.b16 %v862
  %v1164 = vunpack.c.l.b16 %v863
  %v1165 = vunpack.c.h.b16 %v863
  %v1166 = vunpack.c.l.b16 %v864
  %v1167 = vunpack.c.h.b16 %v864
  %v1168 = vunpack.c.l.b16 %v865
  %v1169 = vunpack.c.h.b16 %v865
  %v1170 = vunpack.c.l.b16 %v866
  %v1171 = vunpack.c.h.b16 %v866
  %v1172 = vunpack.c.l.b16 %v867
  %v1173 = vunpack.c.h.b16 %v867
  %v1174 = vunpack.c.l.b16 %v868
  %v1175 = vunpack.c.h.b16 %v868
  %v1176 = vunpack.c.l.b16 %v869
  %v1177 = vunpack.c.h.b16 %v869
  %v1178 = vunpack.c.l.b16 %v870
  %v1179 = vunpack.c.h.b16 %v870
  %v1180 = vunpack.c.l.b16 %v871
  %v1181 = vunpack.c.h.b16 %v871
  %v1182 = vunpack.c.l.b16 %v872
  %v1183 = vunpack.c.h.b16 %v872
  %v1184 = vunpack.c.l.b16 %v873
  %v1185 = vunpack.c.h.b16 %v873
  %v1186 = vunpack.c.l.b16 %v874
  %v1187 = vunpack.c.h.b16 %v874
  %v1188 = vunpack.c.l.b16 %v875
  %v1189 = vunpack.c.h.b16 %v875
  %v1190 = vunpack.c.l.b16 %v876
  %v1191 = vunpack.c.h.b16 %v876
  %v1192 = vunpack.c.l.b16 %v877
  %v1193 = vunpack.c.h.b16 %v877
  %v1194 = vunpack.c.l.b16 %v878
  %v1195 = vunpack.c.h.b16 %v878
  %v1196 = vunpack.c.l.b16 %v879
  %v1197 = vunpack.c.h.b16 %v879
  %v1198 = vunpack.c.l.b16 %v880
  %v1199 = vunpack.c.h.b16 %v880
  %v1200 = vunpack.c.l.b16 %v881
  %v1201 = vunpack.c.h.b16 %v881
  %v1202 = vunpack.c.l.b16 %v882
  %v1203 = vunpack.c.h.b16 %v882
  %v1204 = vunpack.c.l.b16 %v883
  %v1205 = vunpack.c.h.b16 %v883
  %v1206 = vunpack.c.l.b16 %v884
  %v1207 = vunpack.c.h.b16 %v884
  %v1208 = vunpack.c.l.b16 %v885
  %v1209 = vunpack.c.h.b16 %v885
  %v1210 = vunpack.c.l.b16 %v886
  %v1211 = vunpack.c.h.b16 %v886
  %v1212 = vunpack.c.l.b16 %v887
  %v1213 = vunpack.c.h.b16 %v887
  %v1214 = vpack.c.b16 %v1026, %v1022
  %v1215 = vpack.c.b16 %v1027, %v1023
  %v1216 = vpack.c.b16 %v1028, %v1024
  %v1217 = vpack.c.b16 %v1029, %v1025
  %v1218 = vpack.c.b16 %v1034, %v1030
  %v1219 = vpack.c.b16 %v1035, %v1031
  %v1220 = vpack.c.b16 %v1036, %v1032
  %v1221 = vpack.c.b16 %v1037, %v1033
  %v1222 = vpack.c.b16 %v1042, %v1038
  %v1223 = vpack.c.b16 %v1043, %v1039
  %v1224 = vpack.c.b16 %v1044, %v1040
  %v1225 = vpack.c.b16 %v1045, %v1041
  %v1226 = vpack.c.b16 %v1050, %v1046
  %v1227 = vpack.c.b16 %v1051, %v1047
  %v1228 = vpack.c.b16 %v1052, %v1048
  %v1229 = vpack.c.b16 %v1053, %v1049
  %v1230 = vpack.c.b16 %v1058, %v1054
  %v1231 = vpack.c.b16 %v1059, %v1055
  %v1232 = vpack.c.b16 %v1060, %v1056
  %v1233 = vpack.c.b16 %v1061, %v1057
  %v1234 = vpack.c.b16 %v1066, %v1062
  %v1235 = vpack.c.b16 %v1067, %v1063
  %v1236 = vpack.c.b16 %v1068, %v1064
  %v1237 = vpack.c.b16 %v1069, %v1065
  %v1238 = vpack.c.b16 %v1074, %v1070
  %v1239 = vpack.c.b16 %v1075, %v1071
  %v1240 = vpack.c.b16 %v1076, %v1072
  %v1241 = vpack.c.b16 %v1077, %v1073
  %v1242 = vpack.c.b16 %v1082, %v1078
  %v1243 = vpack.c.b16 %v1083, %v1079
  %v1244 = vpack.c.b16 %v1084, %v1080
  %v1245 = vpack.c.b16 %v1085, %v1081
  %v1246 = vpack.c.b16 %v1090, %v1086
  %v1247 = vpack.c.b16 %v1091, %v1087
  %v1248 = vpack.c.b16 %v1092, %v1088
  %v1249 = vpack.c.b16 %v1093, %v1089
  %v1250 = vpack.c.b16 %v1098, %v1094
  %v1251 = vpack.c.b16 %v1099, %v1095
  %v1252 = vpack.c.b16 %v1100, %v1096
  %v1253 = vpack.c.b16 %v1101, %v1097
  %v1254 = vpack.c.b16 %v1106, %v1102
  %v1255 = vpack.c.b16 %v1107, %v1103
  %v1256 = vpack.c.b16 %v1108, %v1104
  %v1257 = vpack.c.b16 %v1109, %v1105
  %v1258 = vpack.c.b16 %v1114, %v1110
  %v1259 = vpack.c.b16 %v1115, %v1111
  %v1260 = vpack.c.b16 %v1116, %v1112
  %v1261 = vpack.c.b16 %v1117, %v1113
  %v1262 = vpack.c.b16 %v1122, %v1118
  %v1263 = vpack.c.b16 %v1123, %v1119
  %v1264 = vpack.c.b16 %v1124, %v1120
  %v1265 = vpack.c.b16 %v1125, %v1121
  %v1266 = vpack.c.b16 %v1130, %v1126
  %v1267 = vpack.c.b16 %v1131, %v1127
  %v1268 = vpack.c.b16 %v1132, %v1128
  %v1269 = vpack.c.b16 %v1133, %v1129
  %v1270 = vpack.c.b16 %v1138, %v1134
  %v1271 = vpack.c.b16 %v1139, %v1135
  %v1272 = vpack.c.b16 %v1140, %v1136
  %v1273 = vpack.c.b16 %v1141, %v1137
  %v1274 = vpack.c.b16 %v1146, %v1142
  %v1275 = vpack.c.b16 %v1147, %v1143
  %v1276 = vpack.c.b16 %v1148, %v1144
  %v1277 = vpack.c.b16 %v1149, %v1145
  %v1278 = vpack.c.b16 %v1154, %v1150
  %v1279 = vpack.c.b16 %v1155, %v1151
  %v1280 = vpack.c.b16 %v1156, %v1152
  %v1281 = vpack.c.b16 %v1157, %v1153
  %v1282 = vpack.c.b16 %v1162, %v1158
  %v1283 = vpack.c.b16 %v1163, %v1159
  %v1284 = vpack.c.b16 %v1164, %v1160
  %v1285 = vpack.c.b16 %v1165, %v1161
  %v1286 = vpack.c.b16 %v1170, %v1166
  %v1287 = vpack.c.b16 %v1171, %v1167
  %v1288 = vpack.c.b16 %v1172, %v1168
  %v1289 = vpack.c.b16 %v1173, %v1169
  %v1290 = vpack.c.b16 %v1178, %v1174
  %v1291 = vpack.c.b16 %v1179, %v1175
  %v1292 = vpack.c.b16 %v1180, %v1176
  %v1293 = vpack.c.b16 %v1181, %v1177
  %v1294 = vpack.c.b16 %v1186, %v1182
  %v1295 = vpack.c.b16 %v1187, %v1183
  %v1296 = vpack.c.b16 %v1188, %v1184
  %v1297 = vpack.c.b16 %v1189, %v1185
  %v1298 = vpack.c.b16 %v1194, %v1190
  %v1299 = vpack.c.b16 %v1195, %v1191
  %v1300 = vpack.c.b16 %v1196, %v1192
  %v1301 = vpack.c.b16 %v1197, %v1193
  %v1302 = vpack.c.b16 %v1202, %v1198
  %v1303 = vpack.c.b16 %v1203, %v1199
  %v1304 = vpack.c.b16 %v1204, %v1200
  %v1305 = vpack.c.b16 %v1205, %v1201
  %v1306 = vpack.c.b16 %v1210, %v1206
  %v1307 = vpack.c.b16 %v1211, %v1207
  %v1308 = vpack.c.b16 %v1212, %v1208
  %v1309 = vpack.c.b16 %v1213, %v1209
  %1406 = vmatprep.subr.bf16.mxu0 %v1243
  %1407 = vmatpush1.bf16.msra.mxu0 %v1242
  %1408 = vmatprep.subr.bf16.mxu0 %v1239
  %1409 = vmatpush1.bf16.msra.mxu0 %v1238
  %1410 = vmatprep.subr.bf16.mxu0 %v1235
  %1411 = vmatpush1.bf16.msra.mxu0 %v1234
  %1412 = vmatprep.subr.bf16.mxu0 %v1231
  %1413 = vmatpush1.bf16.msra.mxu0 %v1230
  %1414 = vmatprep.subr.bf16.mxu0 %v1227
  %1415 = vmatpush1.bf16.msra.mxu0 %v1226
  %1416 = vmatprep.subr.bf16.mxu0 %v1223
  %1417 = vmatpush1.bf16.msra.mxu0 %v1222
  %1418 = vmatprep.subr.bf16.mxu0 %v1219
  %1419 = vmatpush1.bf16.msra.mxu0 %v1218
  %1420 = vmatprep.subr.bf16.mxu0 %v1215
  %1421 = vmatpush1.bf16.msra.mxu0 %v1214
  %1422 = vmatprep.subr.bf16.mxu0 %v1275
  %1423 = vmatpush2.bf16.msra.mxu0 %v1274
  %1424 = vmatprep.subr.bf16.mxu0 %v1271
  %1425 = vmatpush2.bf16.msra.mxu0 %v1270
  %1426 = vmatprep.subr.bf16.mxu0 %v1267
  %1427 = vmatpush2.bf16.msra.mxu0 %v1266
  %1428 = vmatprep.subr.bf16.mxu0 %v1263
  %1429 = vmatpush2.bf16.msra.mxu0 %v1262
  %1430 = vmatprep.subr.bf16.mxu0 %v1259
  %1431 = vmatpush2.bf16.msra.mxu0 %v1258
  %1432 = vmatprep.subr.bf16.mxu0 %v1255
  %1433 = vmatpush2.bf16.msra.mxu0 %v1254
  %1434 = vmatprep.subr.bf16.mxu0 %v1251
  %1435 = vmatpush2.bf16.msra.mxu0 %v1250
  %1436 = vmatprep.subr.bf16.mxu0 %v1247
  %1437 = vmatpush2.bf16.msra.mxu0 %v1246
  %1438 = vmatprep.mubr.bf16.mxu0 %v921
  %1439 = vmatmul.mubr.bf16.gmra.mxu0 %v920
  %v1440 = vpop.f32.mrf.mxu0
  %v1441 = vadd.f32 %v893, %v1440
  %v1442 = vpop.f32.mrf.mxu0
  %v1443 = vadd.f32 %v897, %v1442
  %v1444 = vpop.f32.mrf.mxu0
  %v1445 = vadd.f32 %v893, %v1444
  %v1446 = vpop.f32.mrf.mxu0
  %v1447 = vadd.f32 %v897, %v1446
  %1448 = vdwg.mxu0
  %1449 = vmatprep.subr.bf16.mxu0 %v1307
  %1450 = vmatpush1.bf16.msra.mxu0 %v1306
  %1451 = vmatprep.subr.bf16.mxu0 %v1303
  %1452 = vmatpush1.bf16.msra.mxu0 %v1302
  %1453 = vmatprep.subr.bf16.mxu0 %v1299
  %1454 = vmatpush1.bf16.msra.mxu0 %v1298
  %1455 = vmatprep.subr.bf16.mxu0 %v1295
  %1456 = vmatpush1.bf16.msra.mxu0 %v1294
  %1457 = vmatprep.subr.bf16.mxu0 %v1291
  %1458 = vmatpush1.bf16.msra.mxu0 %v1290
  %1459 = vmatprep.subr.bf16.mxu0 %v1287
  %1460 = vmatpush1.bf16.msra.mxu0 %v1286
  %1461 = vmatprep.subr.bf16.mxu0 %v1283
  %1462 = vmatpush1.bf16.msra.mxu0 %v1282
  %1463 = vmatprep.subr.bf16.mxu0 %v1279
  %1464 = vmatpush1.bf16.msra.mxu0 %v1278
  %1465 = vmatprep.subr.bf16.mxu0 0
  %1466 = vmatpush2.bf16.msra.mxu0 0
  %1467 = vmatprep.subr.bf16.mxu0 0
  %1468 = vmatpush2.bf16.msra.mxu0 0
  %1469 = vmatprep.subr.bf16.mxu0 0
  %1470 = vmatpush2.bf16.msra.mxu0 0
  %1471 = vmatprep.subr.bf16.mxu0 0
  %1472 = vmatpush2.bf16.msra.mxu0 0
  %1473 = vmatprep.subr.bf16.mxu0 0
  %1474 = vmatpush2.bf16.msra.mxu0 0
  %1475 = vmatprep.subr.bf16.mxu0 0
  %1476 = vmatpush2.bf16.msra.mxu0 0
  %1477 = vmatprep.subr.bf16.mxu0 0
  %1478 = vmatpush2.bf16.msra.mxu0 0
  %1479 = vmatprep.subr.bf16.mxu0 0
  %1480 = vmatpush2.bf16.msra.mxu0 0
  %1481 = vmatprep.mubr.bf16.mxu0 0
  %1482 = vmatmul.mubr.bf16.gmra.mxu0 %v922
  %v1483 = vpop.f32.mrf.mxu0
  %v1484 = vadd.f32 %v1441, %v1483
  %v1485 = vpop.f32.mrf.mxu0
  %v1486 = vadd.f32 %v1443, %v1485
  %v1487 = vpop.f32.mrf.mxu0
  %v1488 = vadd.f32 %v1445, %v1487
  %v1489 = vpop.f32.mrf.mxu0
  %v1490 = vadd.f32 %v1447, %v1489
  %1491 = vdwg.mxu0
  %1492 = vmatprep.subr.bf16.mxu0 %v1245
  %1493 = vmatpush1.bf16.msra.mxu0 %v1244
  %1494 = vmatprep.subr.bf16.mxu0 %v1241
  %1495 = vmatpush1.bf16.msra.mxu0 %v1240
  %1496 = vmatprep.subr.bf16.mxu0 %v1237
  %1497 = vmatpush1.bf16.msra.mxu0 %v1236
  %1498 = vmatprep.subr.bf16.mxu0 %v1233
  %1499 = vmatpush1.bf16.msra.mxu0 %v1232
  %1500 = vmatprep.subr.bf16.mxu0 %v1229
  %1501 = vmatpush1.bf16.msra.mxu0 %v1228
  %1502 = vmatprep.subr.bf16.mxu0 %v1225
  %1503 = vmatpush1.bf16.msra.mxu0 %v1224
  %1504 = vmatprep.subr.bf16.mxu0 %v1221
  %1505 = vmatpush1.bf16.msra.mxu0 %v1220
  %1506 = vmatprep.subr.bf16.mxu0 %v1217
  %1507 = vmatpush1.bf16.msra.mxu0 %v1216
  %1508 = vmatprep.subr.bf16.mxu0 %v1277
  %1509 = vmatpush2.bf16.msra.mxu0 %v1276
  %1510 = vmatprep.subr.bf16.mxu0 %v1273
  %1511 = vmatpush2.bf16.msra.mxu0 %v1272
  %1512 = vmatprep.subr.bf16.mxu0 %v1269
  %1513 = vmatpush2.bf16.msra.mxu0 %v1268
  %1514 = vmatprep.subr.bf16.mxu0 %v1265
  %1515 = vmatpush2.bf16.msra.mxu0 %v1264
  %1516 = vmatprep.subr.bf16.mxu0 %v1261
  %1517 = vmatpush2.bf16.msra.mxu0 %v1260
  %1518 = vmatprep.subr.bf16.mxu0 %v1257
  %1519 = vmatpush2.bf16.msra.mxu0 %v1256
  %1520 = vmatprep.subr.bf16.mxu0 %v1253
  %1521 = vmatpush2.bf16.msra.mxu0 %v1252
  %1522 = vmatprep.subr.bf16.mxu0 %v1249
  %1523 = vmatpush2.bf16.msra.mxu0 %v1248
  %1524 = vmatprep.mubr.bf16.mxu0 %v921
  %1525 = vmatmul.mubr.bf16.gmra.mxu0 %v920
  %v1526 = vpop.f32.mrf.mxu0
  %v1527 = vadd.f32 %v901, %v1526
  %v1528 = vpop.f32.mrf.mxu0
  %v1529 = vadd.f32 %v905, %v1528
  %v1530 = vpop.f32.mrf.mxu0
  %v1531 = vadd.f32 %v901, %v1530
  %v1532 = vpop.f32.mrf.mxu0
  %v1533 = vadd.f32 %v905, %v1532
  %1534 = vdwg.mxu0
  %1535 = vmatprep.subr.bf16.mxu0 %v1309
  %1536 = vmatpush1.bf16.msra.mxu0 %v1308
  %1537 = vmatprep.subr.bf16.mxu0 %v1305
  %1538 = vmatpush1.bf16.msra.mxu0 %v1304
  %1539 = vmatprep.subr.bf16.mxu0 %v1301
  %1540 = vmatpush1.bf16.msra.mxu0 %v1300
  %1541 = vmatprep.subr.bf16.mxu0 %v1297
  %1542 = vmatpush1.bf16.msra.mxu0 %v1296
  %1543 = vmatprep.subr.bf16.mxu0 %v1293
  %1544 = vmatpush1.bf16.msra.mxu0 %v1292
  %1545 = vmatprep.subr.bf16.mxu0 %v1289
  %1546 = vmatpush1.bf16.msra.mxu0 %v1288
  %1547 = vmatprep.subr.bf16.mxu0 %v1285
  %1548 = vmatpush1.bf16.msra.mxu0 %v1284
  %1549 = vmatprep.subr.bf16.mxu0 %v1281
  %1550 = vmatpush1.bf16.msra.mxu0 %v1280
  %1551 = vmatprep.subr.bf16.mxu0 0
  %1552 = vmatpush2.bf16.msra.mxu0 0
  %1553 = vmatprep.subr.bf16.mxu0 0
  %1554 = vmatpush2.bf16.msra.mxu0 0
  %1555 = vmatprep.subr.bf16.mxu0 0
  %1556 = vmatpush2.bf16.msra.mxu0 0
  %1557 = vmatprep.subr.bf16.mxu0 0
  %1558 = vmatpush2.bf16.msra.mxu0 0
  %1559 = vmatprep.subr.bf16.mxu0 0
  %1560 = vmatpush2.bf16.msra.mxu0 0
  %1561 = vmatprep.subr.bf16.mxu0 0
  %1562 = vmatpush2.bf16.msra.mxu0 0
  %1563 = vmatprep.subr.bf16.mxu0 0
  %1564 = vmatpush2.bf16.msra.mxu0 0
  %1565 = vmatprep.subr.bf16.mxu0 0
  %1566 = vmatpush2.bf16.msra.mxu0 0
  %1567 = vmatprep.mubr.bf16.mxu0 0
  %1568 = vmatmul.mubr.bf16.gmra.mxu0 %v922
  %v1569 = vpop.f32.mrf.mxu0
  %v1570 = vadd.f32 %v1527, %v1569
  %v1571 = vpop.f32.mrf.mxu0
  %v1572 = vadd.f32 %v1529, %v1571
  %v1573 = vpop.f32.mrf.mxu0
  %v1574 = vadd.f32 %v1531, %v1573
  %v1575 = vpop.f32.mrf.mxu0
  %v1576 = vadd.f32 %v1533, %v1575
  %1577 = vdwg.mxu0
  %v1578 = vmax.f32 %v1484, 0.0
  %v1579 = vmax.f32 %v1486, 0.0
  %v1580 = vmax.f32 %v1570, 0.0
  %v1581 = vmax.f32 %v1572, 0.0
  %v1582 = vmax.f32 %v1488, 0.0
  %v1583 = vmax.f32 %v1490, 0.0
  %v1584 = vmax.f32 %v1574, 0.0
  %v1585 = vmax.f32 %v1576, 0.0
  %v1586 = vpack.c.bf16 %v1582, %v1578
  %v1587 = vpack.c.bf16 %v1583, %v1579
  %v1588 = vpack.c.bf16 %v1584, %v1580
  %v1589 = vpack.c.bf16 %v1585, %v1581
  %v1590 = vld [vmem:[%s9] sm:$0xf]
  %v1591 = vld [vmem:[%s9 + $0x4] sm:$0xf]
  %v1592 = vld [vmem:[%s9 + $0x8] sm:$0xf]
  %v1593 = vld [vmem:[%s9 + $0xc] sm:$0xf]
  %v1594 = vld [vmem:[%s9 + $0x10] sm:$0xf]
  %v1595 = vld [vmem:[%s9 + $0x14] sm:$0xf]
  %v1596 = vld [vmem:[%s9 + $0x18] sm:$0xf]
  %v1597 = vld [vmem:[%s9 + $0x1c] sm:$0xf]
  %v1598 = vld [vmem:[%s9 + $0x20] sm:$0xf]
  %v1599 = vld [vmem:[%s9 + $0x24] sm:$0xf]
  %v1600 = vld [vmem:[%s9 + $0x28] sm:$0xf]
  %v1601 = vld [vmem:[%s9 + $0x2c] sm:$0xf]
  %v1602 = vld [vmem:[%s9 + $0x30] sm:$0xf]
  %v1603 = vld [vmem:[%s9 + $0x34] sm:$0xf]
  %v1604 = vld [vmem:[%s9 + $0x38] sm:$0xf]
  %v1605 = vld [vmem:[%s9 + $0x3c] sm:$0xf]
  %v1606 = vld [vmem:[%s9 + $0x40] sm:$0xf]
  %v1607 = vld [vmem:[%s9 + $0x44] sm:$0xf]
  %v1608 = vld [vmem:[%s9 + $0x48] sm:$0xf]
  %v1609 = vld [vmem:[%s9 + $0x4c] sm:$0xf]
  %v1610 = vld [vmem:[%s9 + $0x50] sm:$0xf]
  %v1611 = vld [vmem:[%s9 + $0x54] sm:$0xf]
  %v1612 = vld [vmem:[%s9 + $0x58] sm:$0xf]
  %v1613 = vld [vmem:[%s9 + $0x5c] sm:$0xf]
  %v1614 = vld [vmem:[%s9 + $0x60] sm:$0xf]
  %v1615 = vld [vmem:[%s9 + $0x64] sm:$0xf]
  %v1616 = vld [vmem:[%s9 + $0x68] sm:$0xf]
  %v1617 = vld [vmem:[%s9 + $0x6c] sm:$0xf]
  %v1618 = vld [vmem:[%s9 + $0x70] sm:$0xf]
  %v1619 = vld [vmem:[%s9 + $0x74] sm:$0xf]
  %v1620 = vld [vmem:[%s9 + $0x78] sm:$0xf]
  %v1621 = vld [vmem:[%s9 + $0x7c] sm:$0xf]
  %v1622 = vld [vmem:[%s9 + $0x80] sm:$0xf]
  %v1623 = vld [vmem:[%s9 + $0x84] sm:$0xf]
  %v1624 = vld [vmem:[%s9 + $0x88] sm:$0xf]
  %v1625 = vld [vmem:[%s9 + $0x8c] sm:$0xf]
  %v1626 = vld [vmem:[%s9 + $0x90] sm:$0xf]
  %v1627 = vld [vmem:[%s9 + $0x94] sm:$0xf]
  %v1628 = vld [vmem:[%s9 + $0x98] sm:$0xf]
  %v1629 = vld [vmem:[%s9 + $0x9c] sm:$0xf]
  %v1630 = vld [vmem:[%s9 + $0xa0] sm:$0xf]
  %v1631 = vld [vmem:[%s9 + $0xa4] sm:$0xf]
  %v1632 = vld [vmem:[%s9 + $0xa8] sm:$0xf]
  %v1633 = vld [vmem:[%s9 + $0xac] sm:$0xf]
  %v1634 = vld [vmem:[%s9 + $0xb0] sm:$0xf]
  %v1635 = vld [vmem:[%s9 + $0xb4] sm:$0xf]
  %v1636 = vld [vmem:[%s9 + $0xb8] sm:$0xf]
  %v1637 = vld [vmem:[%s9 + $0xbc] sm:$0xf]
  %v1638 = vld [vmem:[%s9 + $0xc0] sm:$0xf]
  %v1639 = vld [vmem:[%s9 + $0xc4] sm:$0xf]
  %v1640 = vld [vmem:[%s9 + $0xc8] sm:$0xf]
  %v1641 = vld [vmem:[%s9 + $0xcc] sm:$0xf]
  %v1642 = vld [vmem:[%s9 + $0xd0] sm:$0xf]
  %v1643 = vld [vmem:[%s9 + $0xd4] sm:$0xf]
  %v1644 = vld [vmem:[%s9 + $0xd8] sm:$0xf]
  %v1645 = vld [vmem:[%s9 + $0xdc] sm:$0xf]
  %v1646 = vld [vmem:[%s9 + $0xe0] sm:$0xf]
  %v1647 = vld [vmem:[%s9 + $0xe4] sm:$0xf]
  %v1648 = vld [vmem:[%s9 + $0xe8] sm:$0xf]
  %v1649 = vld [vmem:[%s9 + $0xec] sm:$0xf]
  %v1650 = vld [vmem:[%s9 + $0xf0] sm:$0xf]
  %v1651 = vld [vmem:[%s9 + $0xf4] sm:$0xf]
  %v1652 = vld [vmem:[%s9 + $0xf8] sm:$0xf]
  %v1653 = vld [vmem:[%s9 + $0xfc] sm:$0xf]
  %v1654 = vld [vmem:[%s10] sm:$0x1]
  %v1656 = vlaneseq
  %v1657 = vshrl.u32 %v1656, 7
  %v1658 = vsub.s32 0, %v1657
  %v1659 = vrot.slane %v1654, %v1658
  %v1725 = vunpack.c.l.b16 %v1590
  %v1726 = vunpack.c.l.b16 %v1591
  %v1727 = vunpack.c.l.b16 %v1592
  %v1728 = vunpack.c.l.b16 %v1593
  %v1729 = vunpack.c.l.b16 %v1594
  %v1730 = vunpack.c.l.b16 %v1595
  %v1731 = vunpack.c.l.b16 %v1596
  %v1732 = vunpack.c.l.b16 %v1597
  %v1733 = vunpack.c.l.b16 %v1598
  %v1734 = vunpack.c.l.b16 %v1599
  %v1735 = vunpack.c.l.b16 %v1600
  %v1736 = vunpack.c.l.b16 %v1601
  %v1737 = vunpack.c.l.b16 %v1602
  %v1738 = vunpack.c.l.b16 %v1603
  %v1739 = vunpack.c.l.b16 %v1604
  %v1740 = vunpack.c.l.b16 %v1605
  %v1741 = vunpack.c.l.b16 %v1606
  %v1742 = vunpack.c.l.b16 %v1607
  %v1743 = vunpack.c.l.b16 %v1608
  %v1744 = vunpack.c.l.b16 %v1609
  %v1745 = vunpack.c.l.b16 %v1610
  %v1746 = vunpack.c.l.b16 %v1611
  %v1747 = vunpack.c.l.b16 %v1612
  %v1748 = vunpack.c.l.b16 %v1613
  %v1749 = vunpack.c.l.b16 %v1614
  %v1750 = vunpack.c.l.b16 %v1615
  %v1751 = vunpack.c.l.b16 %v1616
  %v1752 = vunpack.c.l.b16 %v1617
  %v1753 = vunpack.c.l.b16 %v1618
  %v1754 = vunpack.c.l.b16 %v1619
  %v1755 = vunpack.c.l.b16 %v1620
  %v1756 = vunpack.c.l.b16 %v1621
  %v1757 = vunpack.c.l.b16 %v1622
  %v1758 = vunpack.c.l.b16 %v1623
  %v1759 = vunpack.c.l.b16 %v1624
  %v1760 = vunpack.c.l.b16 %v1625
  %v1761 = vunpack.c.l.b16 %v1626
  %v1762 = vunpack.c.l.b16 %v1627
  %v1763 = vunpack.c.l.b16 %v1628
  %v1764 = vunpack.c.l.b16 %v1629
  %v1765 = vunpack.c.l.b16 %v1630
  %v1766 = vunpack.c.l.b16 %v1631
  %v1767 = vunpack.c.l.b16 %v1632
  %v1768 = vunpack.c.l.b16 %v1633
  %v1769 = vunpack.c.l.b16 %v1634
  %v1770 = vunpack.c.l.b16 %v1635
  %v1771 = vunpack.c.l.b16 %v1636
  %v1772 = vunpack.c.l.b16 %v1637
  %v1773 = vunpack.c.l.b16 %v1638
  %v1774 = vunpack.c.l.b16 %v1639
  %v1775 = vunpack.c.l.b16 %v1640
  %v1776 = vunpack.c.l.b16 %v1641
  %v1777 = vunpack.c.l.b16 %v1642
  %v1778 = vunpack.c.l.b16 %v1643
  %v1779 = vunpack.c.l.b16 %v1644
  %v1780 = vunpack.c.l.b16 %v1645
  %v1781 = vunpack.c.l.b16 %v1646
  %v1782 = vunpack.c.l.b16 %v1647
  %v1783 = vunpack.c.l.b16 %v1648
  %v1784 = vunpack.c.l.b16 %v1649
  %v1785 = vunpack.c.l.b16 %v1650
  %v1786 = vunpack.c.l.b16 %v1651
  %v1787 = vunpack.c.l.b16 %v1652
  %v1788 = vunpack.c.l.b16 %v1653
  %v1789 = vpack.c.b16 %v1726, %v1725
  %v1790 = vpack.c.b16 %v1728, %v1727
  %v1791 = vpack.c.b16 %v1730, %v1729
  %v1792 = vpack.c.b16 %v1732, %v1731
  %v1793 = vpack.c.b16 %v1734, %v1733
  %v1794 = vpack.c.b16 %v1736, %v1735
  %v1795 = vpack.c.b16 %v1738, %v1737
  %v1796 = vpack.c.b16 %v1740, %v1739
  %v1797 = vpack.c.b16 %v1742, %v1741
  %v1798 = vpack.c.b16 %v1744, %v1743
  %v1799 = vpack.c.b16 %v1746, %v1745
  %v1800 = vpack.c.b16 %v1748, %v1747
  %v1801 = vpack.c.b16 %v1750, %v1749
  %v1802 = vpack.c.b16 %v1752, %v1751
  %v1803 = vpack.c.b16 %v1754, %v1753
  %v1804 = vpack.c.b16 %v1756, %v1755
  %v1805 = vpack.c.b16 %v1758, %v1757
  %v1806 = vpack.c.b16 %v1760, %v1759
  %v1807 = vpack.c.b16 %v1762, %v1761
  %v1808 = vpack.c.b16 %v1764, %v1763
  %v1809 = vpack.c.b16 %v1766, %v1765
  %v1810 = vpack.c.b16 %v1768, %v1767
  %v1811 = vpack.c.b16 %v1770, %v1769
  %v1812 = vpack.c.b16 %v1772, %v1771
  %v1813 = vpack.c.b16 %v1774, %v1773
  %v1814 = vpack.c.b16 %v1776, %v1775
  %v1815 = vpack.c.b16 %v1778, %v1777
  %v1816 = vpack.c.b16 %v1780, %v1779
  %v1817 = vpack.c.b16 %v1782, %v1781
  %v1818 = vpack.c.b16 %v1784, %v1783
  %v1819 = vpack.c.b16 %v1786, %v1785
  %v1820 = vpack.c.b16 %v1788, %v1787
  %1853 = vmatprep.subr.bf16.mxu0 0
  %1854 = vmatpush1.bf16.msra.mxu0 %v1796
  %1855 = vmatprep.subr.bf16.mxu0 0
  %1856 = vmatpush1.bf16.msra.mxu0 %v1795
  %1857 = vmatprep.subr.bf16.mxu0 0
  %1858 = vmatpush1.bf16.msra.mxu0 %v1794
  %1859 = vmatprep.subr.bf16.mxu0 0
  %1860 = vmatpush1.bf16.msra.mxu0 %v1793
  %1861 = vmatprep.subr.bf16.mxu0 0
  %1862 = vmatpush1.bf16.msra.mxu0 %v1792
  %1863 = vmatprep.subr.bf16.mxu0 0
  %1864 = vmatpush1.bf16.msra.mxu0 %v1791
  %1865 = vmatprep.subr.bf16.mxu0 0
  %1866 = vmatpush1.bf16.msra.mxu0 %v1790
  %1867 = vmatprep.subr.bf16.mxu0 0
  %1868 = vmatpush1.bf16.msra.mxu0 %v1789
  %1869 = vmatprep.subr.bf16.mxu0 0
  %1870 = vmatpush2.bf16.msra.mxu0 %v1804
  %1871 = vmatprep.subr.bf16.mxu0 0
  %1872 = vmatpush2.bf16.msra.mxu0 %v1803
  %1873 = vmatprep.subr.bf16.mxu0 0
  %1874 = vmatpush2.bf16.msra.mxu0 %v1802
  %1875 = vmatprep.subr.bf16.mxu0 0
  %1876 = vmatpush2.bf16.msra.mxu0 %v1801
  %1877 = vmatprep.subr.bf16.mxu0 0
  %1878 = vmatpush2.bf16.msra.mxu0 %v1800
  %1879 = vmatprep.subr.bf16.mxu0 0
  %1880 = vmatpush2.bf16.msra.mxu0 %v1799
  %1881 = vmatprep.subr.bf16.mxu0 0
  %1882 = vmatpush2.bf16.msra.mxu0 %v1798
  %1883 = vmatprep.subr.bf16.mxu0 0
  %1884 = vmatpush2.bf16.msra.mxu0 %v1797
  %1885 = vmatprep.mubr.bf16.mxu0 %v1587
  %1886 = vmatmul.mubr.bf16.gmra.mxu0 %v1586
  %v1887 = vpop.f32.mrf.mxu0
  %v1888 = vadd.f32 %v1659, %v1887
  %v1889 = vpop.f32.mrf.mxu0
  %v1890 = vpop.f32.mrf.mxu0
  %v1891 = vadd.f32 %v1659, %v1890
  %v1892 = vpop.f32.mrf.mxu0
  %1893 = vdwg.mxu0
  %1894 = vmatprep.subr.bf16.mxu0 0
  %1895 = vmatpush1.bf16.msra.mxu0 %v1812
  %1896 = vmatprep.subr.bf16.mxu0 0
  %1897 = vmatpush1.bf16.msra.mxu0 %v1811
  %1898 = vmatprep.subr.bf16.mxu0 0
  %1899 = vmatpush1.bf16.msra.mxu0 %v1810
  %1900 = vmatprep.subr.bf16.mxu0 0
  %1901 = vmatpush1.bf16.msra.mxu0 %v1809
  %1902 = vmatprep.subr.bf16.mxu0 0
  %1903 = vmatpush1.bf16.msra.mxu0 %v1808
  %1904 = vmatprep.subr.bf16.mxu0 0
  %1905 = vmatpush1.bf16.msra.mxu0 %v1807
  %1906 = vmatprep.subr.bf16.mxu0 0
  %1907 = vmatpush1.bf16.msra.mxu0 %v1806
  %1908 = vmatprep.subr.bf16.mxu0 0
  %1909 = vmatpush1.bf16.msra.mxu0 %v1805
  %1910 = vmatprep.subr.bf16.mxu0 0
  %1911 = vmatpush2.bf16.msra.mxu0 %v1820
  %1912 = vmatprep.subr.bf16.mxu0 0
  %1913 = vmatpush2.bf16.msra.mxu0 %v1819
  %1914 = vmatprep.subr.bf16.mxu0 0
  %1915 = vmatpush2.bf16.msra.mxu0 %v1818
  %1916 = vmatprep.subr.bf16.mxu0 0
  %1917 = vmatpush2.bf16.msra.mxu0 %v1817
  %1918 = vmatprep.subr.bf16.mxu0 0
  %1919 = vmatpush2.bf16.msra.mxu0 %v1816
  %1920 = vmatprep.subr.bf16.mxu0 0
  %1921 = vmatpush2.bf16.msra.mxu0 %v1815
  %1922 = vmatprep.subr.bf16.mxu0 0
  %1923 = vmatpush2.bf16.msra.mxu0 %v1814
  %1924 = vmatprep.subr.bf16.mxu0 0
  %1925 = vmatpush2.bf16.msra.mxu0 %v1813
  %1926 = vmatprep.mubr.bf16.mxu0 %v1589
  %1927 = vmatmul.mubr.bf16.gmra.mxu0 %v1588
  %v1928 = vpop.f32.mrf.mxu0
  %v1929 = vadd.f32 %v1888, %v1928
  %v1930 = vpop.f32.mrf.mxu0
  %v1931 = vpop.f32.mrf.mxu0
  %v1932 = vadd.f32 %v1891, %v1931
  %v1933 = vpop.f32.mrf.mxu0
  %1934 = vdwg.mxu0
  %1935 = vst [vmem:[%s11] sm:$0xff] %v1929
  %1936 = vst [vmem:[%s11 + $0x8] sm:$0xff] %v1932
  // Predicated region
  $region46: #{ensemble_forward.1} parent=0 // pred_check
    _
  $region47: #{ensemble_forward.1} parent=0 // pred_check_branch
    %1938 = sbr.rel (0) target = $region49
  $region48: #{ensemble_forward.1} parent=0 // pred_region
    _
  $region49: #{ensemble_forward.1} parent=0 // pred_fallthru
    _
  // Predicated region
  $region50: #{ensemble_forward.1} parent=0 // pred_check
    _
  $region51: #{ensemble_forward.1} parent=0 // pred_check_branch
    %1940 = sbr.rel (0) target = $region53
  $region52: #{ensemble_forward.1} parent=0 // pred_region
    _
  $region53: #{ensemble_forward.1} parent=0 // pred_fallthru
    _

</llo_original>
